<compile_context>
chip_gen: v7x
topology: tpu7x:2x2x1
jax: 0.10.0
libtpu: 0.0.40
codegen_flags: <defaults>
</compile_context>

<pallas_src>
import jax
import jax.numpy as jnp
from jax.experimental import pallas as pl
from jax.experimental.pallas import tpu as pltpu

BN_EPS = 1e-5


def _round_up(x, m):
    return (x + m - 1) // m * m


def _vmem_limit_bytes():
    """Generation-aware scoped-VMEM limit (v5e/v6e: 128 MiB physical, v7x: 64 MiB/TC)."""
    try:
        cap = int(pltpu.get_tpu_info().vmem_capacity_bytes)
    except Exception:
        cap = 64 * 1024 * 1024
    return int(max(32 * 1024 * 1024, min(cap * 3 // 4, 96 * 1024 * 1024)))


# ----------------------------- Pallas kernel (pass 1) -----------------------------


def _make_conv_stats_kernel(stride, Wo, Cp, y_dtype):
    """Fused 3x3-conv-row + BN-partial-stats kernel for one (n, ho) grid step."""
    n_x = 3 * stride  # number of input row refs: 3 kh rows x `stride` column phases

    def kernel(*refs):
        x_refs = refs[:n_x]                                   # each (1, 1, Wpc, Cin)
        w_ref, y_ref, sum_ref, ssq_ref = refs[n_x:]           # (9, Cin, Cp), outs

        # Per-image accumulators live in the (n, 0, 0) block; init at first ho.
        @pl.when(pl.program_id(1) == 0)
        def _init():
            sum_ref[...] = jnp.zeros_like(sum_ref)
            ssq_ref[...] = jnp.zeros_like(ssq_ref)

        x_rows = [r[0, 0] for r in x_refs]                    # each (Wpc, Cin)

        acc = jnp.zeros((Wo, Cp), jnp.float32)
        for kh in range(3):
            for kw in range(3):
                row = x_rows[kh * stride + (kw % stride)]     # phase = kw % stride
                off = kw // stride
                lhs = row[off:off + Wo, :]                    # (Wo, Cin) static slice
                acc += jnp.dot(lhs, w_ref[kh * 3 + kw],
                               preferred_element_type=jnp.float32)

        # Stats from the exact f32 accumulator; y stored narrow (bf16 by default).
        y_ref[0, 0] = acc.astype(y_dtype)
        sum_ref[0] += jnp.sum(acc, axis=0, keepdims=True)     # (1, Cp)
        ssq_ref[0] += jnp.sum(acc * acc, axis=0, keepdims=True)

    return kernel


# --------------------------------- Host wrapper ---------------------------------


def conv_block_forward(x_nchw, weight_oihw, gamma, beta, stride=1, *, use_bf16=True):
    """ConvBlock.forward: relu(batchnorm(conv3x3(x))).  x: (N, Cin, H, W) -> NCHW out."""
    N, Cin, H, W = x_nchw.shape
    Cout = weight_oihw.shape[0]
    s = int(stride)
    Ho = (H + 2 - 3) // s + 1
    Wo = (W + 2 - 3) // s + 1
    Cp = _round_up(Cout, 128)                       # lane-dense output channels
    cdt = jnp.bfloat16 if use_bf16 else jnp.float32

    # --- One cheap host prep pass: NCHW -> NHWC, cast once, pad H/W by 1. ---
    x_nhwc = jnp.transpose(x_nchw, (0, 2, 3, 1)).astype(cdt)
    x_pad = jnp.pad(x_nhwc, ((0, 0), (1, 1), (1, 1), (0, 0)))   # (N, H+2, W+2, Cin)

    # Column-phase split: phase p holds padded columns p, p+s, p+2s, ... so that the
    # in-kernel kw shift (column s*wo + kw) is the static slice [kw//s : kw//s + Wo).
    Wpc = Wo + 2
    phases = []
    for p in range(s):
        xp = x_pad[:, :, p::s, :]
        pad_w = Wpc - xp.shape[2]
        if pad_w > 0:
            xp = jnp.pad(xp, ((0, 0), (0, 0), (0, pad_w), (0, 0)))
        elif pad_w < 0:
            xp = xp[:, :, :Wpc, :]
        phases.append(xp)

    # weight (Cout, Cin, 3, 3) -> (kh*3+kw, Cin, Cp), zero-padded along Cout.
    w_r = jnp.transpose(weight_oihw, (2, 3, 1, 0)).reshape(9, Cin, Cout)
    w_r = jnp.pad(w_r, ((0, 0), (0, 0), (0, Cp - Cout))).astype(cdt)

    # --- Pass 1 (Pallas): fused-im2col conv + per-image BN partial statistics. ---
    in_specs = []
    x_args = []
    for kh in range(3):
        for p in range(s):
            in_specs.append(
                pl.BlockSpec((1, 1, Wpc, Cin),
                             lambda n, h, kh=kh: (n, s * h + kh, 0, 0)))
            x_args.append(phases[p])
    # Grid-invariant weight block (DMA'd once, stays resident).
    in_specs.append(pl.BlockSpec((9, Cin, Cp), lambda n, h: (0, 0, 0)))

    isz = jnp.dtype(cdt).itemsize
    y, s1, s2 = pl.pallas_call(
        _make_conv_stats_kernel(s, Wo, Cp, cdt),
        grid=(N, Ho),
        in_specs=in_specs,
        out_specs=[
            pl.BlockSpec((1, 1, Wo, Cp), lambda n, h: (n, h, 0, 0)),
            pl.BlockSpec((1, 1, Cp), lambda n, h: (n, 0, 0)),
            pl.BlockSpec((1, 1, Cp), lambda n, h: (n, 0, 0)),
        ],
        out_shape=[
            jax.ShapeDtypeStruct((N, Ho, Wo, Cp), cdt),        # conv output (narrow)
            jax.ShapeDtypeStruct((N, 1, Cp), jnp.float32),     # per-image sum
            jax.ShapeDtypeStruct((N, 1, Cp), jnp.float32),     # per-image sum of squares
        ],
        compiler_params=pltpu.CompilerParams(
            # Batch axis "parallel" -> v7x megacore splits pass 1 (per-image stat
            # accumulators keep it race-free); Ho axis accumulates -> "arbitrary".
            dimension_semantics=("parallel", "arbitrary"),
            vmem_limit_bytes=_vmem_limit_bytes()),
        cost_estimate=pl.CostEstimate(
            flops=2 * N * Ho * Wo * 9 * Cin * Cp,
            transcendentals=0,
            bytes_accessed=(3 * s * N * Ho * Wpc * Cin * isz     # input rows (3x halo reuse)
                            + 9 * Cin * Cp * isz                 # weights
                            + N * Ho * Wo * Cp * isz             # y write
                            + 2 * N * Cp * 4)),                  # stats
    )(*x_args, w_r)

    # --- Tiny BN epilogue + fused scale/shift/ReLU/slice/transpose (one XLA pass). ---
    cnt = float(N * Ho * Wo)
    s1 = jnp.sum(s1, axis=0)                                   # (1, Cp)
    s2 = jnp.sum(s2, axis=0)                                   # (1, Cp)
    mean = s1 / cnt
    var = jnp.maximum(s2 / cnt - mean * mean, 0.0)             # biased var (train-mode BN)
    gamma_p = jnp.pad(gamma.reshape(1, Cout).astype(jnp.float32), ((0, 0), (0, Cp - Cout)))
    beta_p = jnp.pad(beta.reshape(1, Cout).astype(jnp.float32), ((0, 0), (0, Cp - Cout)))
    scale = gamma_p * jax.lax.rsqrt(var + BN_EPS)              # (1, Cp)
    shift = beta_p - mean * scale                              # (1, Cp)

    out_nhwc = jnp.maximum(
        y.astype(jnp.float32) * scale.reshape(1, 1, 1, Cp) + shift.reshape(1, 1, 1, Cp),
        0.0)[..., :Cout]
    return jnp.transpose(out_nhwc, (0, 3, 1, 2))               # back to NCHW


# ----------------------------------- Reference -----------------------------------


def _reference(x_nchw, weight_oihw, gamma, beta, stride=1):
    y = jax.lax.conv_general_dilated(
        x_nchw.astype(jnp.float32), weight_oihw.astype(jnp.float32),
        window_strides=(stride, stride), padding=((1, 1), (1, 1)),
        dimension_numbers=("NCHW", "OIHW", "NCHW"))
    mean = y.mean(axis=(0, 2, 3), keepdims=True)
    var = y.var(axis=(0, 2, 3), keepdims=True)                 # biased, train-mode BN
    yn = (y - mean) * jax.lax.rsqrt(var + BN_EPS)
    yn = yn * gamma.reshape(1, -1, 1, 1) + beta.reshape(1, -1, 1, 1)
    return jnp.maximum(yn, 0.0)


if __name__ == "__main__":
    key = jax.random.PRNGKey(0)
    k_x1, k_w1, k_x2, k_w2, k_g2, k_b2 = jax.random.split(key, 6)

    fwd = jax.jit(conv_block_forward, static_argnames=("stride", "use_bf16"))

    N, Cin, Cout, H, W = 2, 4, 8, 16, 16
    x1 = jax.random.normal(k_x1, (N, Cin, H, W), dtype=jnp.float32)
    w1 = jax.random.normal(k_w1, (Cout, Cin, 3, 3), dtype=jnp.float32) * (2.0 / (Cin * 9)) ** 0.5
    g1 = jnp.ones((Cout,), dtype=jnp.float32)
    b1 = jnp.zeros((Cout,), dtype=jnp.float32)
    ref1 = _reference(x1, w1, g1, b1, stride=1)

    # --- Test 1: f32 path, stride 1 (tight tolerance) ---
    out1 = jax.block_until_ready(fwd(x1, w1, g1, b1, stride=1, use_bf16=False))
    assert out1.shape == (N, Cout, H, W), out1.shape
    assert jnp.allclose(out1, ref1, atol=5e-4, rtol=5e-4), float(jnp.max(jnp.abs(out1 - ref1)))

    # --- Test 2: bf16 default path, stride 1 ---
    out2 = jax.block_until_ready(fwd(x1, w1, g1, b1, stride=1, use_bf16=True))
    assert out2.shape == (N, Cout, H, W), out2.shape
    assert jnp.allclose(out2, ref1, atol=7e-2, rtol=7e-2), float(jnp.max(jnp.abs(out2 - ref1)))

    # --- Test 3: odd shapes, non-trivial gamma/beta, bf16 ---
    N2, Cin2, Cout2, H2, W2 = 2, 3, 5, 15, 15
    x2 = jax.random.normal(k_x2, (N2, Cin2, H2, W2), dtype=jnp.float32)
    w2 = jax.random.normal(k_w2, (Cout2, Cin2, 3, 3), dtype=jnp.float32) * (2.0 / (Cin2 * 9)) ** 0.5
    g2 = 0.5 + jax.random.uniform(k_g2, (Cout2,), dtype=jnp.float32)
    b2 = 0.1 * jax.random.normal(k_b2, (Cout2,), dtype=jnp.float32)
    out3 = jax.block_until_ready(fwd(x2, w2, g2, b2, stride=1, use_bf16=True))
    ref3 = _reference(x2, w2, g2, b2, stride=1)
    assert out3.shape == (N2, Cout2, H2, W2), out3.shape
    assert jnp.allclose(out3, ref3, atol=7e-2, rtol=7e-2), float(jnp.max(jnp.abs(out3 - ref3)))

    # --- Test 4: stride 2, f32 path (validates the column-phase split exactly) ---
    out4 = jax.block_until_ready(fwd(x1, w1, g1, b1, stride=2, use_bf16=False))
    ref4 = _reference(x1, w1, g1, b1, stride=2)
    assert out4.shape == (N, Cout, H // 2, W // 2), out4.shape
    assert jnp.allclose(out4, ref4, atol=5e-4, rtol=5e-4), float(jnp.max(jnp.abs(out4 - ref4)))

    # --- Test 5: stride 2, bf16 default ---
    out5 = jax.block_until_ready(fwd(x1, w1, g1, b1, stride=2, use_bf16=True))
    assert out5.shape == (N, Cout, H // 2, W // 2), out5.shape
    assert jnp.allclose(out5, ref4, atol=7e-2, rtol=7e-2), float(jnp.max(jnp.abs(out5 - ref4)))

    print("KERNEL_OK")
</pallas_src>

<mosaic_0001>
module attributes {stable_mosaic.version = 11 : i64} {
  func.func @kernel(%arg0: i32, %arg1: i32, %arg2: memref<1x1x18x4xf32, #tpu.memory_space<vmem>>, %arg3: memref<1x1x18x4xf32, #tpu.memory_space<vmem>>, %arg4: memref<1x1x18x4xf32, #tpu.memory_space<vmem>>, %arg5: memref<9x4x128xf32, #tpu.memory_space<vmem>>, %arg6: memref<1x1x16x128xf32, #tpu.memory_space<vmem>>, %arg7: memref<1x1x128xf32, #tpu.memory_space<vmem>>, %arg8: memref<1x1x128xf32, #tpu.memory_space<vmem>>) attributes {dimension_semantics = [#tpu.dimension_semantics<parallel>, #tpu.dimension_semantics<arbitrary>], iteration_bounds = array<i64: 2, 16>, scalar_prefetch = 0 : i64, scratch_operands = 0 : i64, tpu.core_type = #tpu.core_type<tc>, window_params = [{transform_indices = @transform_0, window_bounds = array<i64: 1, 1, 18, 4>}, {transform_indices = @transform_1, window_bounds = array<i64: 1, 1, 18, 4>}, {transform_indices = @transform_2, window_bounds = array<i64: 1, 1, 18, 4>}, {pipeline_mode = #tpu.pipeline_mode<synchronous>, transform_indices = @transform_3, window_bounds = array<i64: 9, 4, 128>}, {transform_indices = @transform_4, window_bounds = array<i64: 1, 1, 16, 128>}, {transform_indices = @transform_5, window_bounds = array<i64: 1, 1, 128>}, {transform_indices = @transform_6, window_bounds = array<i64: 1, 1, 128>}]} {
    %c0_i32 = arith.constant 0 : i32
    %0 = arith.cmpi eq, %arg1, %c0_i32 : i32
    %1 = arith.extui %0 : i1 to i32
    %c0_i32_0 = arith.constant 0 : i32
    %2 = arith.cmpi ne, %1, %c0_i32_0 : i32
    scf.if %2 {
      %cst_58 = arith.constant 0.000000e+00 : f32
      %75 = vector.broadcast %cst_58 : f32 to vector<1x1x128xf32>
      %c0_59 = arith.constant 0 : index
      %c0_60 = arith.constant 0 : index
      %c0_61 = arith.constant 0 : index
      %76 = vector.load %arg7[%c0_59, %c0_60, %c0_61] : memref<1x1x128xf32, #tpu.memory_space<vmem>>, vector<1x1x128xf32>
      tpu.vector_store %arg7[%c0_59, %c0_60, %c0_61], %75 {strides = array<i32>} : memref<1x1x128xf32, #tpu.memory_space<vmem>>, vector<1x1x128xf32>,
      %cst_62 = arith.constant 0.000000e+00 : f32
      %77 = vector.broadcast %cst_62 : f32 to vector<1x1x128xf32>
      %c0_63 = arith.constant 0 : index
      %c0_64 = arith.constant 0 : index
      %c0_65 = arith.constant 0 : index
      %78 = vector.load %arg8[%c0_63, %c0_64, %c0_65] : memref<1x1x128xf32, #tpu.memory_space<vmem>>, vector<1x1x128xf32>
      tpu.vector_store %arg8[%c0_63, %c0_64, %c0_65], %77 {strides = array<i32>} : memref<1x1x128xf32, #tpu.memory_space<vmem>>, vector<1x1x128xf32>,
    } else {
    }
    %c0 = arith.constant 0 : index
    %c0_1 = arith.constant 0 : index
    %c0_2 = arith.constant 0 : index
    %c0_3 = arith.constant 0 : index
    %3 = vector.load %arg2[%c0, %c0_1, %c0_2, %c0_3] : memref<1x1x18x4xf32, #tpu.memory_space<vmem>>, vector<1x1x18x4xf32>
    %4 = vector.shape_cast %3 : vector<1x1x18x4xf32> to vector<18x4xf32>
    %c0_4 = arith.constant 0 : index
    %c0_5 = arith.constant 0 : index
    %c0_6 = arith.constant 0 : index
    %c0_7 = arith.constant 0 : index
    %5 = vector.load %arg3[%c0_4, %c0_5, %c0_6, %c0_7] : memref<1x1x18x4xf32, #tpu.memory_space<vmem>>, vector<1x1x18x4xf32>
    %6 = vector.shape_cast %5 : vector<1x1x18x4xf32> to vector<18x4xf32>
    %c0_8 = arith.constant 0 : index
    %c0_9 = arith.constant 0 : index
    %c0_10 = arith.constant 0 : index
    %c0_11 = arith.constant 0 : index
    %7 = vector.load %arg4[%c0_8, %c0_9, %c0_10, %c0_11] : memref<1x1x18x4xf32, #tpu.memory_space<vmem>>, vector<1x1x18x4xf32>
    %8 = vector.shape_cast %7 : vector<1x1x18x4xf32> to vector<18x4xf32>
    %cst = arith.constant 0.000000e+00 : f32
    %9 = vector.broadcast %cst : f32 to vector<16x128xf32>
    %10 = vector.extract_strided_slice %4 {offsets = [0, 0], sizes = [16, 4], strides = [1, 1]} : vector<18x4xf32> to vector<16x4xf32>
    %c0_12 = arith.constant 0 : index
    %c0_13 = arith.constant 0 : index
    %c0_14 = arith.constant 0 : index
    %11 = vector.load %arg5[%c0_12, %c0_13, %c0_14] : memref<9x4x128xf32, #tpu.memory_space<vmem>>, vector<1x4x128xf32>
    %12 = vector.shape_cast %11 : vector<1x4x128xf32> to vector<4x128xf32>
    %cst_15 = arith.constant dense<0.000000e+00> : vector<16x128xf32>
    %13 = tpu.matmul %10, %12, %cst_15 {dimension_numbers = #tpu.dot_dimension_numbers<[1], [0], [0], [1], [0, 0, 1, 1], [], []>} : vector<16x4xf32>, vector<4x128xf32>, vector<16x128xf32> -> vector<16x128xf32>
    %14 = arith.addf %9, %13 : vector<16x128xf32>
    %15 = vector.extract_strided_slice %4 {offsets = [1, 0], sizes = [16, 4], strides = [1, 1]} : vector<18x4xf32> to vector<16x4xf32>
    %c1 = arith.constant 1 : index
    %c0_16 = arith.constant 0 : index
    %c0_17 = arith.constant 0 : index
    %16 = vector.load %arg5[%c1, %c0_16, %c0_17] : memref<9x4x128xf32, #tpu.memory_space<vmem>>, vector<1x4x128xf32>
    %17 = vector.shape_cast %16 : vector<1x4x128xf32> to vector<4x128xf32>
    %cst_18 = arith.constant dense<0.000000e+00> : vector<16x128xf32>
    %18 = tpu.matmul %15, %17, %cst_18 {dimension_numbers = #tpu.dot_dimension_numbers<[1], [0], [0], [1], [0, 0, 1, 1], [], []>} : vector<16x4xf32>, vector<4x128xf32>, vector<16x128xf32> -> vector<16x128xf32>
    %19 = arith.addf %14, %18 : vector<16x128xf32>
    %20 = vector.extract_strided_slice %4 {offsets = [2, 0], sizes = [16, 4], strides = [1, 1]} : vector<18x4xf32> to vector<16x4xf32>
    %c2 = arith.constant 2 : index
    %c0_19 = arith.constant 0 : index
    %c0_20 = arith.constant 0 : index
    %21 = vector.load %arg5[%c2, %c0_19, %c0_20] : memref<9x4x128xf32, #tpu.memory_space<vmem>>, vector<1x4x128xf32>
    %22 = vector.shape_cast %21 : vector<1x4x128xf32> to vector<4x128xf32>
    %cst_21 = arith.constant dense<0.000000e+00> : vector<16x128xf32>
    %23 = tpu.matmul %20, %22, %cst_21 {dimension_numbers = #tpu.dot_dimension_numbers<[1], [0], [0], [1], [0, 0, 1, 1], [], []>} : vector<16x4xf32>, vector<4x128xf32>, vector<16x128xf32> -> vector<16x128xf32>
    %24 = arith.addf %19, %23 : vector<16x128xf32>
    %25 = vector.extract_strided_slice %6 {offsets = [0, 0], sizes = [16, 4], strides = [1, 1]} : vector<18x4xf32> to vector<16x4xf32>
    %c3 = arith.constant 3 : index
    %c0_22 = arith.constant 0 : index
    %c0_23 = arith.constant 0 : index
    %26 = vector.load %arg5[%c3, %c0_22, %c0_23] : memref<9x4x128xf32, #tpu.memory_space<vmem>>, vector<1x4x128xf32>
    %27 = vector.shape_cast %26 : vector<1x4x128xf32> to vector<4x128xf32>
    %cst_24 = arith.constant dense<0.000000e+00> : vector<16x128xf32>
    %28 = tpu.matmul %25, %27, %cst_24 {dimension_numbers = #tpu.dot_dimension_numbers<[1], [0], [0], [1], [0, 0, 1, 1], [], []>} : vector<16x4xf32>, vector<4x128xf32>, vector<16x128xf32> -> vector<16x128xf32>
    %29 = arith.addf %24, %28 : vector<16x128xf32>
    %30 = vector.extract_strided_slice %6 {offsets = [1, 0], sizes = [16, 4], strides = [1, 1]} : vector<18x4xf32> to vector<16x4xf32>
    %c4 = arith.constant 4 : index
    %c0_25 = arith.constant 0 : index
    %c0_26 = arith.constant 0 : index
    %31 = vector.load %arg5[%c4, %c0_25, %c0_26] : memref<9x4x128xf32, #tpu.memory_space<vmem>>, vector<1x4x128xf32>
    %32 = vector.shape_cast %31 : vector<1x4x128xf32> to vector<4x128xf32>
    %cst_27 = arith.constant dense<0.000000e+00> : vector<16x128xf32>
    %33 = tpu.matmul %30, %32, %cst_27 {dimension_numbers = #tpu.dot_dimension_numbers<[1], [0], [0], [1], [0, 0, 1, 1], [], []>} : vector<16x4xf32>, vector<4x128xf32>, vector<16x128xf32> -> vector<16x128xf32>
    %34 = arith.addf %29, %33 : vector<16x128xf32>
    %35 = vector.extract_strided_slice %6 {offsets = [2, 0], sizes = [16, 4], strides = [1, 1]} : vector<18x4xf32> to vector<16x4xf32>
    %c5 = arith.constant 5 : index
    %c0_28 = arith.constant 0 : index
    %c0_29 = arith.constant 0 : index
    %36 = vector.load %arg5[%c5, %c0_28, %c0_29] : memref<9x4x128xf32, #tpu.memory_space<vmem>>, vector<1x4x128xf32>
    %37 = vector.shape_cast %36 : vector<1x4x128xf32> to vector<4x128xf32>
    %cst_30 = arith.constant dense<0.000000e+00> : vector<16x128xf32>
    %38 = tpu.matmul %35, %37, %cst_30 {dimension_numbers = #tpu.dot_dimension_numbers<[1], [0], [0], [1], [0, 0, 1, 1], [], []>} : vector<16x4xf32>, vector<4x128xf32>, vector<16x128xf32> -> vector<16x128xf32>
    %39 = arith.addf %34, %38 : vector<16x128xf32>
    %40 = vector.extract_strided_slice %8 {offsets = [0, 0], sizes = [16, 4], strides = [1, 1]} : vector<18x4xf32> to vector<16x4xf32>
    %c6 = arith.constant 6 : index
    %c0_31 = arith.constant 0 : index
    %c0_32 = arith.constant 0 : index
    %41 = vector.load %arg5[%c6, %c0_31, %c0_32] : memref<9x4x128xf32, #tpu.memory_space<vmem>>, vector<1x4x128xf32>
    %42 = vector.shape_cast %41 : vector<1x4x128xf32> to vector<4x128xf32>
    %cst_33 = arith.constant dense<0.000000e+00> : vector<16x128xf32>
    %43 = tpu.matmul %40, %42, %cst_33 {dimension_numbers = #tpu.dot_dimension_numbers<[1], [0], [0], [1], [0, 0, 1, 1], [], []>} : vector<16x4xf32>, vector<4x128xf32>, vector<16x128xf32> -> vector<16x128xf32>
    %44 = arith.addf %39, %43 : vector<16x128xf32>
    %45 = vector.extract_strided_slice %8 {offsets = [1, 0], sizes = [16, 4], strides = [1, 1]} : vector<18x4xf32> to vector<16x4xf32>
    %c7 = arith.constant 7 : index
    %c0_34 = arith.constant 0 : index
    %c0_35 = arith.constant 0 : index
    %46 = vector.load %arg5[%c7, %c0_34, %c0_35] : memref<9x4x128xf32, #tpu.memory_space<vmem>>, vector<1x4x128xf32>
    %47 = vector.shape_cast %46 : vector<1x4x128xf32> to vector<4x128xf32>
    %cst_36 = arith.constant dense<0.000000e+00> : vector<16x128xf32>
    %48 = tpu.matmul %45, %47, %cst_36 {dimension_numbers = #tpu.dot_dimension_numbers<[1], [0], [0], [1], [0, 0, 1, 1], [], []>} : vector<16x4xf32>, vector<4x128xf32>, vector<16x128xf32> -> vector<16x128xf32>
    %49 = arith.addf %44, %48 : vector<16x128xf32>
    %50 = vector.extract_strided_slice %8 {offsets = [2, 0], sizes = [16, 4], strides = [1, 1]} : vector<18x4xf32> to vector<16x4xf32>
    %c8 = arith.constant 8 : index
    %c0_37 = arith.constant 0 : index
    %c0_38 = arith.constant 0 : index
    %51 = vector.load %arg5[%c8, %c0_37, %c0_38] : memref<9x4x128xf32, #tpu.memory_space<vmem>>, vector<1x4x128xf32>
    %52 = vector.shape_cast %51 : vector<1x4x128xf32> to vector<4x128xf32>
    %cst_39 = arith.constant dense<0.000000e+00> : vector<16x128xf32>
    %53 = tpu.matmul %50, %52, %cst_39 {dimension_numbers = #tpu.dot_dimension_numbers<[1], [0], [0], [1], [0, 0, 1, 1], [], []>} : vector<16x4xf32>, vector<4x128xf32>, vector<16x128xf32> -> vector<16x128xf32>
    %54 = arith.addf %49, %53 : vector<16x128xf32>
    %c0_40 = arith.constant 0 : index
    %c0_41 = arith.constant 0 : index
    %c0_42 = arith.constant 0 : index
    %c0_43 = arith.constant 0 : index
    %55 = vector.load %arg6[%c0_40, %c0_41, %c0_42, %c0_43] : memref<1x1x16x128xf32, #tpu.memory_space<vmem>>, vector<1x1x16x128xf32>
    %56 = vector.shape_cast %55 : vector<1x1x16x128xf32> to vector<16x128xf32>
    %57 = vector.shape_cast %54 : vector<16x128xf32> to vector<1x1x16x128xf32>
    tpu.vector_store %arg6[%c0_40, %c0_41, %c0_42, %c0_43], %57 {strides = array<i32>} : memref<1x1x16x128xf32, #tpu.memory_space<vmem>>, vector<1x1x16x128xf32>,
    %c0_44 = arith.constant 0 : index
    %c0_45 = arith.constant 0 : index
    %c0_46 = arith.constant 0 : index
    %58 = vector.load %arg7[%c0_44, %c0_45, %c0_46] : memref<1x1x128xf32, #tpu.memory_space<vmem>>, vector<1x1x128xf32>
    %59 = vector.shape_cast %58 : vector<1x1x128xf32> to vector<1x128xf32>
    %cst_47 = arith.constant dense<0.000000e+00> : vector<128xf32>
    %60 = vector.multi_reduction <add>, %54, %cst_47 [0] : vector<16x128xf32> to vector<128xf32>
    %61 = vector.shape_cast %60 : vector<128xf32> to vector<1x128xf32>
    %62 = arith.addf %59, %61 : vector<1x128xf32>
    %c0_48 = arith.constant 0 : index
    %c0_49 = arith.constant 0 : index
    %c0_50 = arith.constant 0 : index
    %63 = vector.load %arg7[%c0_48, %c0_49, %c0_50] : memref<1x1x128xf32, #tpu.memory_space<vmem>>, vector<1x1x128xf32>
    %64 = vector.shape_cast %63 : vector<1x1x128xf32> to vector<1x128xf32>
    %65 = vector.shape_cast %62 : vector<1x128xf32> to vector<1x1x128xf32>
    tpu.vector_store %arg7[%c0_48, %c0_49, %c0_50], %65 {strides = array<i32>} : memref<1x1x128xf32, #tpu.memory_space<vmem>>, vector<1x1x128xf32>,
    %c0_51 = arith.constant 0 : index
    %c0_52 = arith.constant 0 : index
    %c0_53 = arith.constant 0 : index
    %66 = vector.load %arg8[%c0_51, %c0_52, %c0_53] : memref<1x1x128xf32, #tpu.memory_space<vmem>>, vector<1x1x128xf32>
    %67 = vector.shape_cast %66 : vector<1x1x128xf32> to vector<1x128xf32>
    %68 = arith.mulf %54, %54 : vector<16x128xf32>
    %cst_54 = arith.constant dense<0.000000e+00> : vector<128xf32>
    %69 = vector.multi_reduction <add>, %68, %cst_54 [0] : vector<16x128xf32> to vector<128xf32>
    %70 = vector.shape_cast %69 : vector<128xf32> to vector<1x128xf32>
    %71 = arith.addf %67, %70 : vector<1x128xf32>
    %c0_55 = arith.constant 0 : index
    %c0_56 = arith.constant 0 : index
    %c0_57 = arith.constant 0 : index
    %72 = vector.load %arg8[%c0_55, %c0_56, %c0_57] : memref<1x1x128xf32, #tpu.memory_space<vmem>>, vector<1x1x128xf32>
    %73 = vector.shape_cast %72 : vector<1x1x128xf32> to vector<1x128xf32>
    %74 = vector.shape_cast %71 : vector<1x128xf32> to vector<1x1x128xf32>
    tpu.vector_store %arg8[%c0_55, %c0_56, %c0_57], %74 {strides = array<i32>} : memref<1x1x128xf32, #tpu.memory_space<vmem>>, vector<1x1x128xf32>,
    return
  }
  func.func @transform_0(%arg0: i32, %arg1: i32) -> (i32, i32, i32, i32) {
    %c1_i32 = arith.constant 1 : i32
    %0 = arith.muli %c1_i32, %arg1 : i32
    %c0_i32 = arith.constant 0 : i32
    %1 = arith.addi %0, %c0_i32 : i32
    %c0_i32_0 = arith.constant 0 : i32
    %c0_i32_1 = arith.constant 0 : i32
    %c0_i32_2 = arith.constant 0 : i32
    return %arg0, %1, %c0_i32_0, %c0_i32_1 : i32, i32, i32, i32
  }
  func.func @transform_1(%arg0: i32, %arg1: i32) -> (i32, i32, i32, i32) {
    %c1_i32 = arith.constant 1 : i32
    %0 = arith.muli %c1_i32, %arg1 : i32
    %c1_i32_0 = arith.constant 1 : i32
    %1 = arith.addi %0, %c1_i32_0 : i32
    %c0_i32 = arith.constant 0 : i32
    %c0_i32_1 = arith.constant 0 : i32
    %c0_i32_2 = arith.constant 0 : i32
    return %arg0, %1, %c0_i32, %c0_i32_1 : i32, i32, i32, i32
  }
  func.func @transform_2(%arg0: i32, %arg1: i32) -> (i32, i32, i32, i32) {
    %c1_i32 = arith.constant 1 : i32
    %0 = arith.muli %c1_i32, %arg1 : i32
    %c2_i32 = arith.constant 2 : i32
    %1 = arith.addi %0, %c2_i32 : i32
    %c0_i32 = arith.constant 0 : i32
    %c0_i32_0 = arith.constant 0 : i32
    %c0_i32_1 = arith.constant 0 : i32
    return %arg0, %1, %c0_i32, %c0_i32_0 : i32, i32, i32, i32
  }
  func.func @transform_3(%arg0: i32, %arg1: i32) -> (i32, i32, i32) {
    %c0_i32 = arith.constant 0 : i32
    %c0_i32_0 = arith.constant 0 : i32
    %c0_i32_1 = arith.constant 0 : i32
    %c0_i32_2 = arith.constant 0 : i32
    return %c0_i32, %c0_i32_0, %c0_i32_1 : i32, i32, i32
  }
  func.func @transform_4(%arg0: i32, %arg1: i32) -> (i32, i32, i32, i32) {
    %c0_i32 = arith.constant 0 : i32
    %c0_i32_0 = arith.constant 0 : i32
    %c0_i32_1 = arith.constant 0 : i32
    return %arg0, %arg1, %c0_i32, %c0_i32_0 : i32, i32, i32, i32
  }
  func.func @transform_5(%arg0: i32, %arg1: i32) -> (i32, i32, i32) {
    %c0_i32 = arith.constant 0 : i32
    %c0_i32_0 = arith.constant 0 : i32
    %c0_i32_1 = arith.constant 0 : i32
    return %arg0, %c0_i32, %c0_i32_0 : i32, i32, i32
  }
  func.func @transform_6(%arg0: i32, %arg1: i32) -> (i32, i32, i32) {
    %c0_i32 = arith.constant 0 : i32
    %c0_i32_0 = arith.constant 0 : i32
    %c0_i32_1 = arith.constant 0 : i32
    return %arg0, %c0_i32, %c0_i32_0 : i32, i32, i32
  }
}

</mosaic_0001>

<llo_original>
// kernel: conv_block_forward.1
$region0: #{conv_block_forward.1}
  #allocation0 [shape = 'u32[]', space=smem, size = 0x4, offset = 0x4, fixed_abs, tag = 'smem constant byte address 0x4 - core index']
  #allocation1 [shape = 'u32[144,128]{1,0:T(1,128)}', space=vmem, size = 0x12000, scoped, tag = 'internal scratch']
  %s0 = inlined_call_operand.vmem [shape: f32[2,18,18,4], index: 0, kind: input, shape index: {}, may-alias: {0,1,2}]
  %s1 = inlined_call_operand.vmem [shape: f32[2,18,18,4], index: 1, kind: input, shape index: {}, may-alias: {0,1,2}]
  %s2 = inlined_call_operand.vmem [shape: f32[2,18,18,4], index: 2, kind: input, shape index: {}, may-alias: {0,1,2}]
  %s3 = inlined_call_operand.vmem [shape: f32[9,4,128], index: 3, kind: input, shape index: {}]
  %s4 = inlined_call_operand.vmem [shape: f32[2,16,16,128], index: 4, kind: output, shape index: {0}]
  %s5 = inlined_call_operand.vmem [shape: f32[2,1,128], index: 5, kind: output, shape index: {1}]
  %s6 = inlined_call_operand.vmem [shape: f32[2,1,128], index: 6, kind: output, shape index: {2}]
  %7 = xla_tuple %s4, %s5, %s6
  %s8 = sld [smem:[#allocation0]]
  $region69: #{conv_block_forward.1} parent=0
    _
  %s10 = ssub.s32 1, %s8
  %s11 = scalar_select 0, %s10, %s8
  loop: start=0, step=1, limit=34
  $region2: #{conv_block_forward.1} parent=0 // loop_pre_header
    _
  $region3: #{conv_block_forward.1} parent=0 // loop_header
    %s13 = sphi 0, %s17
    %p14 = scmp.ge.s32.totalorder %s13, 34
    %s20 = sphi 0, %s32
    %s21 = sphi 0, %s28
    %s22 = sphi 0, %s20
    %s23 = sphi 0, %s21
    %s24 = sphi 0, %s22
    %s25 = sphi 0, %s23
    %s37 = sphi 0, %s39
    %s40 = sphi 0, %s37
    %s41 = sphi 0, %s40
    %s57 = sphi 0, %s41
    %s67 = sphi 0, %s69
    %s70 = sphi 0, %s67
    %s71 = sphi 0, %s70
    %s87 = sphi 0, %s71
    %s97 = sphi 0, %s99
    %s100 = sphi 0, %s97
    %s101 = sphi 0, %s100
    %s117 = sphi 0, %s101
    %s121 = sphi 0, %s121
    %s123 = sphi 0, %s121
    %s124 = sphi 0, %s123
    %s138 = sphi 0, %s124
    %s146 = sphi 0, %s148
    %s149 = sphi 0, %s146
    %s150 = sphi 0, %s149
    %s166 = sphi 0, %s150
    %s172 = sphi 0, %s174
    %s175 = sphi 0, %s172
    %s176 = sphi 0, %s175
    %s192 = sphi 0, %s176
    %s198 = sphi 0, %s200
    %s201 = sphi 0, %s198
    %s202 = sphi 0, %s201
    %s218 = sphi 0, %s202
  $region4: #{conv_block_forward.1} parent=0 // loop_header_branch
    %16 = sbr.rel (%p14) target = $region8
  $region5: #{conv_block_forward.1} parent=0 // loop_body
    %s18 = ssub.s32 %s13, 1
    %s19 = ssub.s32 %s13, 2
    %s26 = sadd.s32 1, %s21
    %p27 = scmp.ge.s32.totalorder %s26, 16
    %s28 = scalar_select %p27, 0, %s26
    %s29 = sadd.s32 1, %s20
    %s30 = scalar_select %p27, %s29, %s20
    %p31 = scmp.ge.s32.totalorder %s30, 2
    %s32 = scalar_select %p31, 0, %s30
    %s33 = ssub.s32 %s20, %s32
    %s34 = ssub.s32 %s21, %s28
    %s35 = sor.u32 %s33, %s34
    %p36 = scmp.eq.s32.totalorder %s35, 0
    %s38 = sadd.s32 %s37, 1
    %s39 = scalar_select %p36, %s37, %s38
    %p42 = pneg %p36
    %p43 = scmp.eq.s32.totalorder %s13, 31
    %p44 = por %p42, %p43
    %p45 = scmp.ne.s32.totalorder %s37, %s40
    %p46 = scmp.eq.s32.totalorder %s13, 0
    %p47 = por %p45, %p46
    %p48 = scmp.ne.s32.totalorder %s37, %s40
    %p49 = scmp.eq.s32.totalorder %s18, 31
    %p50 = por %p48, %p49
    %p51 = scmp.ne.s32.totalorder %s40, %s41
    %p52 = scmp.eq.s32.totalorder %s18, 0
    %p53 = por %p51, %p52
    %p54 = scmp.ne.s32.totalorder %s40, %s41
    %p55 = scmp.eq.s32.totalorder %s19, 31
    %p56 = por %p54, %p55
    %p58 = scmp.ne.s32.totalorder %s41, %s57
    %p59 = scmp.eq.s32.totalorder %s19, 0
    %p60 = por %p58, %p59
    %s61 = sadd.s32 %s21, 1
    %s62 = sadd.s32 %s28, 1
    %s63 = ssub.s32 %s20, %s32
    %s64 = ssub.s32 %s61, %s62
    %s65 = sor.u32 %s63, %s64
    %p66 = scmp.eq.s32.totalorder %s65, 0
    %s68 = sadd.s32 %s67, 1
    %s69 = scalar_select %p66, %s67, %s68
    %p72 = pneg %p66
    %p73 = scmp.eq.s32.totalorder %s13, 31
    %p74 = por %p72, %p73
    %p75 = scmp.ne.s32.totalorder %s67, %s70
    %p76 = scmp.eq.s32.totalorder %s13, 0
    %p77 = por %p75, %p76
    %p78 = scmp.ne.s32.totalorder %s67, %s70
    %p79 = scmp.eq.s32.totalorder %s18, 31
    %p80 = por %p78, %p79
    %p81 = scmp.ne.s32.totalorder %s70, %s71
    %p82 = scmp.eq.s32.totalorder %s18, 0
    %p83 = por %p81, %p82
    %p84 = scmp.ne.s32.totalorder %s70, %s71
    %p85 = scmp.eq.s32.totalorder %s19, 31
    %p86 = por %p84, %p85
    %p88 = scmp.ne.s32.totalorder %s71, %s87
    %p89 = scmp.eq.s32.totalorder %s19, 0
    %p90 = por %p88, %p89
    %s91 = sadd.s32 %s21, 2
    %s92 = sadd.s32 %s28, 2
    %s93 = ssub.s32 %s20, %s32
    %s94 = ssub.s32 %s91, %s92
    %s95 = sor.u32 %s93, %s94
    %p96 = scmp.eq.s32.totalorder %s95, 0
    %s98 = sadd.s32 %s97, 1
    %s99 = scalar_select %p96, %s97, %s98
    %p102 = pneg %p96
    %p103 = scmp.eq.s32.totalorder %s13, 31
    %p104 = por %p102, %p103
    %p105 = scmp.ne.s32.totalorder %s97, %s100
    %p106 = scmp.eq.s32.totalorder %s13, 0
    %p107 = por %p105, %p106
    %p108 = scmp.ne.s32.totalorder %s97, %s100
    %p109 = scmp.eq.s32.totalorder %s18, 31
    %p110 = por %p108, %p109
    %p111 = scmp.ne.s32.totalorder %s100, %s101
    %p112 = scmp.eq.s32.totalorder %s18, 0
    %p113 = por %p111, %p112
    %p114 = scmp.ne.s32.totalorder %s100, %s101
    %p115 = scmp.eq.s32.totalorder %s19, 31
    %p116 = por %p114, %p115
    %p118 = scmp.ne.s32.totalorder %s101, %s117
    %p119 = scmp.eq.s32.totalorder %s19, 0
    %p120 = por %p118, %p119
    %s122 = sadd.s32 %s121, 1
    %p125 = scmp.eq.s32.totalorder %s13, 31
    %p126 = scmp.ne.s32.totalorder %s121, %s123
    %p127 = scmp.eq.s32.totalorder %s13, 0
    %p128 = por %p126, %p127
    %p129 = scmp.ne.s32.totalorder %s121, %s123
    %p130 = scmp.eq.s32.totalorder %s18, 31
    %p131 = por %p129, %p130
    %p132 = scmp.ne.s32.totalorder %s123, %s124
    %p133 = scmp.eq.s32.totalorder %s18, 0
    %p134 = por %p132, %p133
    %p135 = scmp.ne.s32.totalorder %s123, %s124
    %p136 = scmp.eq.s32.totalorder %s19, 31
    %p137 = por %p135, %p136
    %p139 = scmp.ne.s32.totalorder %s124, %s138
    %p140 = scmp.eq.s32.totalorder %s19, 0
    %p141 = por %p139, %p140
    %s142 = ssub.s32 %s20, %s32
    %s143 = ssub.s32 %s21, %s28
    %s144 = sor.u32 %s142, %s143
    %p145 = scmp.eq.s32.totalorder %s144, 0
    %s147 = sadd.s32 %s146, 1
    %s148 = scalar_select %p145, %s146, %s147
    %p151 = pneg %p145
    %p152 = scmp.eq.s32.totalorder %s13, 31
    %p153 = por %p151, %p152
    %p154 = scmp.ne.s32.totalorder %s146, %s149
    %p155 = scmp.eq.s32.totalorder %s13, 0
    %p156 = por %p154, %p155
    %p157 = scmp.ne.s32.totalorder %s146, %s149
    %p158 = scmp.eq.s32.totalorder %s18, 31
    %p159 = por %p157, %p158
    %p160 = scmp.ne.s32.totalorder %s149, %s150
    %p161 = scmp.eq.s32.totalorder %s18, 0
    %p162 = por %p160, %p161
    %p163 = scmp.ne.s32.totalorder %s149, %s150
    %p164 = scmp.eq.s32.totalorder %s19, 31
    %p165 = por %p163, %p164
    %p167 = scmp.ne.s32.totalorder %s150, %s166
    %p168 = scmp.eq.s32.totalorder %s19, 0
    %p169 = por %p167, %p168
    %s170 = ssub.s32 %s20, %s32
    %p171 = scmp.eq.s32.totalorder %s170, 0
    %s173 = sadd.s32 %s172, 1
    %s174 = scalar_select %p171, %s172, %s173
    %p177 = pneg %p171
    %p178 = scmp.eq.s32.totalorder %s13, 31
    %p179 = por %p177, %p178
    %p180 = scmp.ne.s32.totalorder %s172, %s175
    %p181 = scmp.eq.s32.totalorder %s13, 0
    %p182 = por %p180, %p181
    %p183 = scmp.ne.s32.totalorder %s172, %s175
    %p184 = scmp.eq.s32.totalorder %s18, 31
    %p185 = por %p183, %p184
    %p186 = scmp.ne.s32.totalorder %s175, %s176
    %p187 = scmp.eq.s32.totalorder %s18, 0
    %p188 = por %p186, %p187
    %p189 = scmp.ne.s32.totalorder %s175, %s176
    %p190 = scmp.eq.s32.totalorder %s19, 31
    %p191 = por %p189, %p190
    %p193 = scmp.ne.s32.totalorder %s176, %s192
    %p194 = scmp.eq.s32.totalorder %s19, 0
    %p195 = por %p193, %p194
    %s196 = ssub.s32 %s20, %s32
    %p197 = scmp.eq.s32.totalorder %s196, 0
    %s199 = sadd.s32 %s198, 1
    %s200 = scalar_select %p197, %s198, %s199
    %p203 = pneg %p197
    %p204 = scmp.eq.s32.totalorder %s13, 31
    %p205 = por %p203, %p204
    %p206 = scmp.ne.s32.totalorder %s198, %s201
    %p207 = scmp.eq.s32.totalorder %s13, 0
    %p208 = por %p206, %p207
    %p209 = scmp.ne.s32.totalorder %s198, %s201
    %p210 = scmp.eq.s32.totalorder %s18, 31
    %p211 = por %p209, %p210
    %p212 = scmp.ne.s32.totalorder %s201, %s202
    %p213 = scmp.eq.s32.totalorder %s18, 0
    %p214 = por %p212, %p213
    %p215 = scmp.ne.s32.totalorder %s201, %s202
    %p216 = scmp.eq.s32.totalorder %s19, 31
    %p217 = por %p215, %p216
    %p219 = scmp.ne.s32.totalorder %s202, %s218
    %p220 = scmp.eq.s32.totalorder %s19, 0
    %p221 = por %p219, %p220
    %p222 = scmp.le.s32.totalorder 1, %s13
    %p223 = scmp.lt.s32.totalorder %s13, 33
    %p224 = pnand %p222, %p223
    %p225 = pneg %p224
    // Predicated region
    $region9: #{conv_block_forward.1} parent=5 // pred_check
      _
    $region10: #{conv_block_forward.1} parent=5 // pred_check_branch
      %227 = sbr.rel (%p224) target = $region12
    $region11: #{conv_block_forward.1} parent=5 // pred_region
      %s228 = ssub.s32 %s13, 1
      // Predicated region
      $region13: #{conv_block_forward.1} parent=11 // pred_check
        %p229 = pneg %p134
      $region14: #{conv_block_forward.1} parent=11 // pred_check_branch
        %231 = sbr.rel (%p229) target = $region16
      $region15: #{conv_block_forward.1} parent=11 // pred_region
        _
      $region16: #{conv_block_forward.1} parent=11 // pred_fallthru
        _
    $region12: #{conv_block_forward.1} parent=5 // pred_fallthru
      _
    %p232 = scmp.lt.s32.totalorder %s13, 32
    // Predicated region
    $region17: #{conv_block_forward.1} parent=5 // pred_check
      %p233 = pneg %p232
    $region18: #{conv_block_forward.1} parent=5 // pred_check_branch
      %235 = sbr.rel (%p233) target = $region20
    $region19: #{conv_block_forward.1} parent=5 // pred_region
      // Predicated region
      $region21: #{conv_block_forward.1} parent=19 // pred_check
        %p236 = pneg %p47
      $region22: #{conv_block_forward.1} parent=19 // pred_check_branch
        %238 = sbr.rel (%p236) target = $region24
      $region23: #{conv_block_forward.1} parent=19 // pred_region
        %p239 = scmp.lt.s32.totalorder %s20, 1
        %s240 = scalar_select %p239, %s20, 1
        %p241 = scmp.lt.s32.totalorder %s21, 17
        %s242 = scalar_select %p241, %s21, 17
        %s243 = smul.addr %s242, 3
        %s244 = smul.addr %s240, 54
        %s245 = sadd.s32 %s243, %s244
        %s246 = smul.addr %s245, 8
        %s247 = scalar_lea.vmem %s0, %s246
      $region24: #{conv_block_forward.1} parent=19 // pred_fallthru
        _
      // Predicated region
      $region25: #{conv_block_forward.1} parent=19 // pred_check
        %p248 = pneg %p77
      $region26: #{conv_block_forward.1} parent=19 // pred_check_branch
        %250 = sbr.rel (%p248) target = $region28
      $region27: #{conv_block_forward.1} parent=19 // pred_region
        %s251 = sadd.s32 %s21, 1
        %p252 = scmp.lt.s32.totalorder %s20, 1
        %s253 = scalar_select %p252, %s20, 1
        %p254 = scmp.lt.s32.totalorder %s251, 17
        %s255 = scalar_select %p254, %s251, 17
        %s256 = smul.addr %s255, 3
        %s257 = smul.addr %s253, 54
        %s258 = sadd.s32 %s256, %s257
        %s259 = smul.addr %s258, 8
        %s260 = scalar_lea.vmem %s1, %s259
        %s261 = sadd.s32 %s21, 1
      $region28: #{conv_block_forward.1} parent=19 // pred_fallthru
        _
      // Predicated region
      $region29: #{conv_block_forward.1} parent=19 // pred_check
        %p262 = pneg %p107
      $region30: #{conv_block_forward.1} parent=19 // pred_check_branch
        %264 = sbr.rel (%p262) target = $region32
      $region31: #{conv_block_forward.1} parent=19 // pred_region
        %s265 = sadd.s32 %s21, 2
        %p266 = scmp.lt.s32.totalorder %s20, 1
        %s267 = scalar_select %p266, %s20, 1
        %p268 = scmp.lt.s32.totalorder %s265, 17
        %s269 = scalar_select %p268, %s265, 17
        %s270 = smul.addr %s269, 3
        %s271 = smul.addr %s267, 54
        %s272 = sadd.s32 %s270, %s271
        %s273 = smul.addr %s272, 8
        %s274 = scalar_lea.vmem %s2, %s273
        %s275 = sadd.s32 %s21, 2
      $region32: #{conv_block_forward.1} parent=19 // pred_fallthru
        _
    $region20: #{conv_block_forward.1} parent=5 // pred_fallthru
      _
    %p276 = scmp.le.s32.totalorder 1, %s13
    %p277 = scmp.lt.s32.totalorder %s13, 33
    %p278 = pnand %p276, %p277
    %p279 = pneg %p278
    // Predicated region
    $region33: #{conv_block_forward.1} parent=5 // pred_check
      _
    $region34: #{conv_block_forward.1} parent=5 // pred_check_branch
      %281 = sbr.rel (%p278) target = $region36
    $region35: #{conv_block_forward.1} parent=5 // pred_region
      %s282 = ssub.s32 %s13, 1
      %p283 = scmp.lt.s32.totalorder %s22, 1
      %s284 = scalar_select %p283, %s22, 1
      %p285 = scmp.lt.s32.totalorder %s23, 17
      %s286 = scalar_select %p285, %s23, 17
      %s287 = smul.addr %s286, 3
      %s288 = smul.addr %s284, 54
      %s289 = sadd.s32 %s287, %s288
      %s290 = smul.addr %s289, 8
      %s291 = scalar_lea.vmem %s0, %s290
      %p292 = pneg %p53
      %p293 = pneg %p50
      %s294 = sadd.s32 %s23, 1
      %p295 = scmp.lt.s32.totalorder %s22, 1
      %s296 = scalar_select %p295, %s22, 1
      %p297 = scmp.lt.s32.totalorder %s294, 17
      %s298 = scalar_select %p297, %s294, 17
      %s299 = smul.addr %s298, 3
      %s300 = smul.addr %s296, 54
      %s301 = sadd.s32 %s299, %s300
      %s302 = smul.addr %s301, 8
      %s303 = scalar_lea.vmem %s1, %s302
      %p304 = pneg %p83
      %p305 = pneg %p80
      %s306 = sadd.s32 %s23, 2
      %p307 = scmp.lt.s32.totalorder %s22, 1
      %s308 = scalar_select %p307, %s22, 1
      %p309 = scmp.lt.s32.totalorder %s306, 17
      %s310 = scalar_select %p309, %s306, 17
      %s311 = smul.addr %s310, 3
      %s312 = smul.addr %s308, 54
      %s313 = sadd.s32 %s311, %s312
      %s314 = smul.addr %s313, 8
      %s315 = scalar_lea.vmem %s2, %s314
      %p316 = pneg %p113
      %p317 = pneg %p110
      %p318 = pneg %p134
      %p319 = pneg %p131
      %p320 = pneg %p162
      %p321 = pneg %p159
      %p322 = scmp.lt.s32.totalorder %s22, 1
      %s323 = scalar_select %p322, %s22, 1
      %p324 = scmp.lt.s32.totalorder %s23, 15
      %s325 = scalar_select %p324, %s23, 15
      %s326 = smul.addr %s325, 2
      %s327 = smul.addr %s323, 32
      %s328 = sadd.s32 %s326, %s327
      %s329 = smul.addr %s328, 8
      %s330 = scalar_lea.vmem %s4, %s329
      %p331 = pneg %p188
      %p332 = pneg %p185
      %p333 = scmp.lt.s32.totalorder %s22, 1
      %s334 = scalar_select %p333, %s22, 1
      %s335 = scalar_lea.vmem %s5, %s334
      %p336 = pneg %p214
      %p337 = pneg %p211
      %p338 = scmp.lt.s32.totalorder %s22, 1
      %s339 = scalar_select %p338, %s22, 1
      %s340 = scalar_lea.vmem %s6, %s339
      %p341 = scmp.lt.s32.totalorder %s22, 1
      %s342 = scalar_select %p341, %s22, 1
      %p343 = scmp.lt.s32.totalorder %s23, 17
      %s344 = scalar_select %p343, %s23, 17
      %s345 = smul.addr %s344, 3
      %s346 = smul.addr %s342, 54
      %s347 = sadd.s32 %s345, %s346
      %s348 = smul.addr %s347, 8
      %s349 = scalar_lea.vmem %s0, %s348
      %s350 = sadd.s32 %s23, 1
      %p351 = scmp.lt.s32.totalorder %s22, 1
      %s352 = scalar_select %p351, %s22, 1
      %p353 = scmp.lt.s32.totalorder %s350, 17
      %s354 = scalar_select %p353, %s350, 17
      %s355 = smul.addr %s354, 3
      %s356 = smul.addr %s352, 54
      %s357 = sadd.s32 %s355, %s356
      %s358 = smul.addr %s357, 8
      %s359 = scalar_lea.vmem %s1, %s358
      %s360 = sadd.s32 %s23, 1
      %s361 = sadd.s32 %s23, 2
      %p362 = scmp.lt.s32.totalorder %s22, 1
      %s363 = scalar_select %p362, %s22, 1
      %p364 = scmp.lt.s32.totalorder %s361, 17
      %s365 = scalar_select %p364, %s361, 17
      %s366 = smul.addr %s365, 3
      %s367 = smul.addr %s363, 54
      %s368 = sadd.s32 %s366, %s367
      %s369 = smul.addr %s368, 8
      %s370 = scalar_lea.vmem %s2, %s369
      %s371 = sadd.s32 %s23, 2
      %p372 = scmp.lt.s32.totalorder %s22, 1
      %s373 = scalar_select %p372, %s22, 1
      %p374 = scmp.lt.s32.totalorder %s23, 15
      %s375 = scalar_select %p374, %s23, 15
      %s376 = smul.addr %s375, 2
      %s377 = smul.addr %s373, 32
      %s378 = sadd.s32 %s376, %s377
      %s379 = smul.addr %s378, 8
      %s380 = scalar_lea.vmem %s4, %s379
      %p381 = scmp.lt.s32.totalorder %s22, 1
      %s382 = scalar_select %p381, %s22, 1
      %s383 = scalar_lea.vmem %s5, %s382
      %p384 = scmp.lt.s32.totalorder %s22, 1
      %s385 = scalar_select %p384, %s22, 1
      %s386 = scalar_lea.vmem %s6, %s385
      %p387 = scmp.eq.s32.totalorder %s23, 0
      // Predicated region
      $region37: #{conv_block_forward.1} parent=35 // pred_check
        %p388 = pneg %p387
      $region38: #{conv_block_forward.1} parent=35 // pred_check_branch
        %390 = sbr.rel (%p388) target = $region40
      $region39: #{conv_block_forward.1} parent=35 // pred_region
        %391 = vst [vmem:[%s383] sm:$0x1] 0.0
        %392 = vst [vmem:[%s386] sm:$0x1] 0.0
      $region40: #{conv_block_forward.1} parent=35 // pred_fallthru
        _
      %v393 = vld [vmem:[%s349] sm:$0xff]
      %v394 = vld [vmem:[%s349 + $0x8] sm:$0xff]
      %v395 = vld [vmem:[%s349 + $0x10] sm:$0x3]
      %v396 = vld [vmem:[%s359] sm:$0xff]
      %v397 = vld [vmem:[%s359 + $0x8] sm:$0xff]
      %v398 = vld [vmem:[%s359 + $0x10] sm:$0x3]
      %v399 = vld [vmem:[%s370] sm:$0xff]
      %v400 = vld [vmem:[%s370 + $0x8] sm:$0xff]
      %v401 = vld [vmem:[%s370 + $0x10] sm:$0x3]
      %v402 = vld [vmem:[%s3] sm:$0xf]
      %s403 = scalar_lea.vmem %s3, 4
      %v404 = vld [vmem:[%s403] sm:$0xf]
      %vm408 = vcmask 1046528
      %v409 = vrot.slane %v393, 1
      %v410 = vrot.slane %v394, 1
      %v411 = vsel %vm408, %v409, %v410
      %v412 = vrot.slane %v395, 1
      %v413 = vsel %vm408, %v410, %v412
      %vm414 = vcmask 31744
      %v415 = vsel %vm414, %v411, 0
      %v417 = vsel %vm414, %v413, 0
      %vm419 = vcmask 1043456
      %v421 = vsel %vm419, %v404, 0
      %423 = vmatprep.subr.mxu0 0.0
      %424 = vmatpush1.msra.mxu0 %v421
      %425 = vmatprep.subr.mxu0 0.0
      %426 = vmatpush1.msra.mxu0 0.0
      %427 = vmatprep.subr.mxu0 0.0
      %428 = vmatpush1.msra.mxu0 0.0
      %429 = vmatprep.subr.mxu0 0.0
      %430 = vmatpush1.msra.mxu0 0.0
      %431 = vmatprep.subr.mxu0 0.0
      %432 = vmatpush1.msra.mxu0 0.0
      %433 = vmatprep.subr.mxu0 0.0
      %434 = vmatpush1.msra.mxu0 0.0
      %435 = vmatprep.subr.mxu0 0.0
      %436 = vmatpush1.msra.mxu0 0.0
      %437 = vmatprep.subr.mxu0 0.0
      %438 = vmatpush1.msra.mxu0 0.0
      %439 = vmatprep.subr.mxu0 0.0
      %440 = vmatpush1.msra.mxu0 0.0
      %441 = vmatprep.subr.mxu0 0.0
      %442 = vmatpush1.msra.mxu0 0.0
      %443 = vmatprep.subr.mxu0 0.0
      %444 = vmatpush1.msra.mxu0 0.0
      %445 = vmatprep.subr.mxu0 0.0
      %446 = vmatpush1.msra.mxu0 0.0
      %447 = vmatprep.subr.mxu0 0.0
      %448 = vmatpush1.msra.mxu0 0.0
      %449 = vmatprep.subr.mxu0 0.0
      %450 = vmatpush1.msra.mxu0 0.0
      %451 = vmatprep.subr.mxu0 0.0
      %452 = vmatpush1.msra.mxu0 0.0
      %453 = vmatprep.subr.mxu0 0.0
      %454 = vmatpush1.msra.mxu0 0.0
      %455 = vmatprep.subr.mxu0 0.0
      %456 = vmatpush1.msra.mxu0 0.0
      %457 = vmatprep.subr.mxu0 0.0
      %458 = vmatpush1.msra.mxu0 0.0
      %459 = vmatprep.subr.mxu0 0.0
      %460 = vmatpush1.msra.mxu0 0.0
      %461 = vmatprep.subr.mxu0 0.0
      %462 = vmatpush1.msra.mxu0 0.0
      %463 = vmatprep.subr.mxu0 0.0
      %464 = vmatpush1.msra.mxu0 0.0
      %465 = vmatprep.subr.mxu0 0.0
      %466 = vmatpush1.msra.mxu0 0.0
      %467 = vmatprep.subr.mxu0 0.0
      %468 = vmatpush1.msra.mxu0 0.0
      %469 = vmatprep.subr.mxu0 0.0
      %470 = vmatpush1.msra.mxu0 0.0
      %471 = vmatprep.subr.mxu0 0.0
      %472 = vmatpush1.msra.mxu0 0.0
      %473 = vmatprep.subr.mxu0 0.0
      %474 = vmatpush1.msra.mxu0 0.0
      %475 = vmatprep.subr.mxu0 0.0
      %476 = vmatpush1.msra.mxu0 0.0
      %477 = vmatprep.subr.mxu0 0.0
      %478 = vmatpush1.msra.mxu0 0.0
      %479 = vmatprep.subr.mxu0 0.0
      %480 = vmatpush1.msra.mxu0 0.0
      %481 = vmatprep.subr.mxu0 0.0
      %482 = vmatpush1.msra.mxu0 0.0
      %483 = vmatprep.subr.mxu0 0.0
      %484 = vmatpush1.msra.mxu0 0.0
      %485 = vmatprep.subr.mxu0 0.0
      %486 = vmatpush1.msra.mxu0 0.0
      %487 = vmatprep.mubr.f32.mxu0 0.0
      %488 = vmatmul.mubr.f32.gmra.mrb[0].mxu0 %v415
      %v489 = vpop.f32.mrb[0].mxu0
      %v490 = vadd.f32 0.0, %v489
      %v491 = vpop.f32.mrb[0].mxu0
      %492 = vmatprep.mubr.f32.mxu0 0.0
      %493 = vmatmul.mubr.f32.gmra.mrb[0].mxu0 %v417
      %v494 = vpop.f32.mrb[0].mxu0
      %v495 = vadd.f32 0.0, %v494
      %v496 = vpop.f32.mrb[0].mxu0
      %497 = vdwg.mxu0
      %v498 = vsel %vm414, %v393, 0
      %v500 = vsel %vm414, %v394, 0
      %v503 = vsel %vm419, %v402, 0
      %505 = vmatprep.subr.mxu0 0.0
      %506 = vmatpush1.msra.mxu0 %v503
      %507 = vmatprep.subr.mxu0 0.0
      %508 = vmatpush1.msra.mxu0 0.0
      %509 = vmatprep.subr.mxu0 0.0
      %510 = vmatpush1.msra.mxu0 0.0
      %511 = vmatprep.subr.mxu0 0.0
      %512 = vmatpush1.msra.mxu0 0.0
      %513 = vmatprep.subr.mxu0 0.0
      %514 = vmatpush1.msra.mxu0 0.0
      %515 = vmatprep.subr.mxu0 0.0
      %516 = vmatpush1.msra.mxu0 0.0
      %517 = vmatprep.subr.mxu0 0.0
      %518 = vmatpush1.msra.mxu0 0.0
      %519 = vmatprep.subr.mxu0 0.0
      %520 = vmatpush1.msra.mxu0 0.0
      %521 = vmatprep.subr.mxu0 0.0
      %522 = vmatpush1.msra.mxu0 0.0
      %523 = vmatprep.subr.mxu0 0.0
      %524 = vmatpush1.msra.mxu0 0.0
      %525 = vmatprep.subr.mxu0 0.0
      %526 = vmatpush1.msra.mxu0 0.0
      %527 = vmatprep.subr.mxu0 0.0
      %528 = vmatpush1.msra.mxu0 0.0
      %529 = vmatprep.subr.mxu0 0.0
      %530 = vmatpush1.msra.mxu0 0.0
      %531 = vmatprep.subr.mxu0 0.0
      %532 = vmatpush1.msra.mxu0 0.0
      %533 = vmatprep.subr.mxu0 0.0
      %534 = vmatpush1.msra.mxu0 0.0
      %535 = vmatprep.subr.mxu0 0.0
      %536 = vmatpush1.msra.mxu0 0.0
      %537 = vmatprep.subr.mxu0 0.0
      %538 = vmatpush1.msra.mxu0 0.0
      %539 = vmatprep.subr.mxu0 0.0
      %540 = vmatpush1.msra.mxu0 0.0
      %541 = vmatprep.subr.mxu0 0.0
      %542 = vmatpush1.msra.mxu0 0.0
      %543 = vmatprep.subr.mxu0 0.0
      %544 = vmatpush1.msra.mxu0 0.0
      %545 = vmatprep.subr.mxu0 0.0
      %546 = vmatpush1.msra.mxu0 0.0
      %547 = vmatprep.subr.mxu0 0.0
      %548 = vmatpush1.msra.mxu0 0.0
      %549 = vmatprep.subr.mxu0 0.0
      %550 = vmatpush1.msra.mxu0 0.0
      %551 = vmatprep.subr.mxu0 0.0
      %552 = vmatpush1.msra.mxu0 0.0
      %553 = vmatprep.subr.mxu0 0.0
      %554 = vmatpush1.msra.mxu0 0.0
      %555 = vmatprep.subr.mxu0 0.0
      %556 = vmatpush1.msra.mxu0 0.0
      %557 = vmatprep.subr.mxu0 0.0
      %558 = vmatpush1.msra.mxu0 0.0
      %559 = vmatprep.subr.mxu0 0.0
      %560 = vmatpush1.msra.mxu0 0.0
      %561 = vmatprep.subr.mxu0 0.0
      %562 = vmatpush1.msra.mxu0 0.0
      %563 = vmatprep.subr.mxu0 0.0
      %564 = vmatpush1.msra.mxu0 0.0
      %565 = vmatprep.subr.mxu0 0.0
      %566 = vmatpush1.msra.mxu0 0.0
      %567 = vmatprep.subr.mxu0 0.0
      %568 = vmatpush1.msra.mxu0 0.0
      %569 = vmatprep.mubr.f32.mxu0 0.0
      %570 = vmatmul.mubr.f32.gmra.mrb[0].mxu0 %v498
      %v571 = vpop.f32.mrb[0].mxu0
      %v572 = vadd.f32 %v490, %v571
      %v573 = vpop.f32.mrb[0].mxu0
      %574 = vmatprep.mubr.f32.mxu0 0.0
      %575 = vmatmul.mubr.f32.gmra.mrb[0].mxu0 %v500
      %v576 = vpop.f32.mrb[0].mxu0
      %v577 = vadd.f32 %v495, %v576
      %v578 = vpop.f32.mrb[0].mxu0
      %579 = vdwg.mxu0
      %s580 = scalar_lea.vmem %s3, 8
      %v581 = vld [vmem:[%s580] sm:$0xf]
      %vm582 = vcmask 1045504
      %v583 = vrot.slane %v393, 2
      %v584 = vrot.slane %v394, 2
      %v585 = vsel %vm582, %v583, %v584
      %v586 = vrot.slane %v395, 2
      %v587 = vsel %vm582, %v584, %v586
      %v588 = vsel %vm414, %v585, 0
      %v590 = vsel %vm414, %v587, 0
      %v593 = vsel %vm419, %v581, 0
      %595 = vmatprep.subr.mxu0 0.0
      %596 = vmatpush1.msra.mxu0 %v593
      %597 = vmatprep.subr.mxu0 0.0
      %598 = vmatpush1.msra.mxu0 0.0
      %599 = vmatprep.subr.mxu0 0.0
      %600 = vmatpush1.msra.mxu0 0.0
      %601 = vmatprep.subr.mxu0 0.0
      %602 = vmatpush1.msra.mxu0 0.0
      %603 = vmatprep.subr.mxu0 0.0
      %604 = vmatpush1.msra.mxu0 0.0
      %605 = vmatprep.subr.mxu0 0.0
      %606 = vmatpush1.msra.mxu0 0.0
      %607 = vmatprep.subr.mxu0 0.0
      %608 = vmatpush1.msra.mxu0 0.0
      %609 = vmatprep.subr.mxu0 0.0
      %610 = vmatpush1.msra.mxu0 0.0
      %611 = vmatprep.subr.mxu0 0.0
      %612 = vmatpush1.msra.mxu0 0.0
      %613 = vmatprep.subr.mxu0 0.0
      %614 = vmatpush1.msra.mxu0 0.0
      %615 = vmatprep.subr.mxu0 0.0
      %616 = vmatpush1.msra.mxu0 0.0
      %617 = vmatprep.subr.mxu0 0.0
      %618 = vmatpush1.msra.mxu0 0.0
      %619 = vmatprep.subr.mxu0 0.0
      %620 = vmatpush1.msra.mxu0 0.0
      %621 = vmatprep.subr.mxu0 0.0
      %622 = vmatpush1.msra.mxu0 0.0
      %623 = vmatprep.subr.mxu0 0.0
      %624 = vmatpush1.msra.mxu0 0.0
      %625 = vmatprep.subr.mxu0 0.0
      %626 = vmatpush1.msra.mxu0 0.0
      %627 = vmatprep.subr.mxu0 0.0
      %628 = vmatpush1.msra.mxu0 0.0
      %629 = vmatprep.subr.mxu0 0.0
      %630 = vmatpush1.msra.mxu0 0.0
      %631 = vmatprep.subr.mxu0 0.0
      %632 = vmatpush1.msra.mxu0 0.0
      %633 = vmatprep.subr.mxu0 0.0
      %634 = vmatpush1.msra.mxu0 0.0
      %635 = vmatprep.subr.mxu0 0.0
      %636 = vmatpush1.msra.mxu0 0.0
      %637 = vmatprep.subr.mxu0 0.0
      %638 = vmatpush1.msra.mxu0 0.0
      %639 = vmatprep.subr.mxu0 0.0
      %640 = vmatpush1.msra.mxu0 0.0
      %641 = vmatprep.subr.mxu0 0.0
      %642 = vmatpush1.msra.mxu0 0.0
      %643 = vmatprep.subr.mxu0 0.0
      %644 = vmatpush1.msra.mxu0 0.0
      %645 = vmatprep.subr.mxu0 0.0
      %646 = vmatpush1.msra.mxu0 0.0
      %647 = vmatprep.subr.mxu0 0.0
      %648 = vmatpush1.msra.mxu0 0.0
      %649 = vmatprep.subr.mxu0 0.0
      %650 = vmatpush1.msra.mxu0 0.0
      %651 = vmatprep.subr.mxu0 0.0
      %652 = vmatpush1.msra.mxu0 0.0
      %653 = vmatprep.subr.mxu0 0.0
      %654 = vmatpush1.msra.mxu0 0.0
      %655 = vmatprep.subr.mxu0 0.0
      %656 = vmatpush1.msra.mxu0 0.0
      %657 = vmatprep.subr.mxu0 0.0
      %658 = vmatpush1.msra.mxu0 0.0
      %659 = vmatprep.mubr.f32.mxu0 0.0
      %660 = vmatmul.mubr.f32.gmra.mrb[0].mxu0 %v588
      %v661 = vpop.f32.mrb[0].mxu0
      %v662 = vadd.f32 0.0, %v661
      %v663 = vpop.f32.mrb[0].mxu0
      %664 = vmatprep.mubr.f32.mxu0 0.0
      %665 = vmatmul.mubr.f32.gmra.mrb[0].mxu0 %v590
      %v666 = vpop.f32.mrb[0].mxu0
      %v667 = vadd.f32 0.0, %v666
      %v668 = vpop.f32.mrb[0].mxu0
      %669 = vdwg.mxu0
      %v670 = vadd.f32 %v572, %v662
      %v671 = vadd.f32 %v577, %v667
      %s672 = scalar_lea.vmem %s3, 12
      %v673 = vld [vmem:[%s672] sm:$0xf]
      %v675 = vsel %vm414, %v396, 0
      %v678 = vsel %vm414, %v397, 0
      %v681 = vsel %vm419, %v673, 0
      %683 = vmatprep.subr.mxu0 0.0
      %684 = vmatpush1.msra.mxu0 %v681
      %685 = vmatprep.subr.mxu0 0.0
      %686 = vmatpush1.msra.mxu0 0.0
      %687 = vmatprep.subr.mxu0 0.0
      %688 = vmatpush1.msra.mxu0 0.0
      %689 = vmatprep.subr.mxu0 0.0
      %690 = vmatpush1.msra.mxu0 0.0
      %691 = vmatprep.subr.mxu0 0.0
      %692 = vmatpush1.msra.mxu0 0.0
      %693 = vmatprep.subr.mxu0 0.0
      %694 = vmatpush1.msra.mxu0 0.0
      %695 = vmatprep.subr.mxu0 0.0
      %696 = vmatpush1.msra.mxu0 0.0
      %697 = vmatprep.subr.mxu0 0.0
      %698 = vmatpush1.msra.mxu0 0.0
      %699 = vmatprep.subr.mxu0 0.0
      %700 = vmatpush1.msra.mxu0 0.0
      %701 = vmatprep.subr.mxu0 0.0
      %702 = vmatpush1.msra.mxu0 0.0
      %703 = vmatprep.subr.mxu0 0.0
      %704 = vmatpush1.msra.mxu0 0.0
      %705 = vmatprep.subr.mxu0 0.0
      %706 = vmatpush1.msra.mxu0 0.0
      %707 = vmatprep.subr.mxu0 0.0
      %708 = vmatpush1.msra.mxu0 0.0
      %709 = vmatprep.subr.mxu0 0.0
      %710 = vmatpush1.msra.mxu0 0.0
      %711 = vmatprep.subr.mxu0 0.0
      %712 = vmatpush1.msra.mxu0 0.0
      %713 = vmatprep.subr.mxu0 0.0
      %714 = vmatpush1.msra.mxu0 0.0
      %715 = vmatprep.subr.mxu0 0.0
      %716 = vmatpush1.msra.mxu0 0.0
      %717 = vmatprep.subr.mxu0 0.0
      %718 = vmatpush1.msra.mxu0 0.0
      %719 = vmatprep.subr.mxu0 0.0
      %720 = vmatpush1.msra.mxu0 0.0
      %721 = vmatprep.subr.mxu0 0.0
      %722 = vmatpush1.msra.mxu0 0.0
      %723 = vmatprep.subr.mxu0 0.0
      %724 = vmatpush1.msra.mxu0 0.0
      %725 = vmatprep.subr.mxu0 0.0
      %726 = vmatpush1.msra.mxu0 0.0
      %727 = vmatprep.subr.mxu0 0.0
      %728 = vmatpush1.msra.mxu0 0.0
      %729 = vmatprep.subr.mxu0 0.0
      %730 = vmatpush1.msra.mxu0 0.0
      %731 = vmatprep.subr.mxu0 0.0
      %732 = vmatpush1.msra.mxu0 0.0
      %733 = vmatprep.subr.mxu0 0.0
      %734 = vmatpush1.msra.mxu0 0.0
      %735 = vmatprep.subr.mxu0 0.0
      %736 = vmatpush1.msra.mxu0 0.0
      %737 = vmatprep.subr.mxu0 0.0
      %738 = vmatpush1.msra.mxu0 0.0
      %739 = vmatprep.subr.mxu0 0.0
      %740 = vmatpush1.msra.mxu0 0.0
      %741 = vmatprep.subr.mxu0 0.0
      %742 = vmatpush1.msra.mxu0 0.0
      %743 = vmatprep.subr.mxu0 0.0
      %744 = vmatpush1.msra.mxu0 0.0
      %745 = vmatprep.subr.mxu0 0.0
      %746 = vmatpush1.msra.mxu0 0.0
      %747 = vmatprep.mubr.f32.mxu0 0.0
      %748 = vmatmul.mubr.f32.gmra.mrb[0].mxu0 %v675
      %v749 = vpop.f32.mrb[0].mxu0
      %v750 = vadd.f32 0.0, %v749
      %v751 = vpop.f32.mrb[0].mxu0
      %752 = vmatprep.mubr.f32.mxu0 0.0
      %753 = vmatmul.mubr.f32.gmra.mrb[0].mxu0 %v678
      %v754 = vpop.f32.mrb[0].mxu0
      %v755 = vadd.f32 0.0, %v754
      %v756 = vpop.f32.mrb[0].mxu0
      %757 = vdwg.mxu0
      %v758 = vadd.f32 %v670, %v750
      %v759 = vadd.f32 %v671, %v755
      %s760 = scalar_lea.vmem %s3, 16
      %v761 = vld [vmem:[%s760] sm:$0xf]
      %v763 = vrot.slane %v396, 1
      %v764 = vrot.slane %v397, 1
      %v765 = vsel %vm408, %v763, %v764
      %v766 = vrot.slane %v398, 1
      %v767 = vsel %vm408, %v764, %v766
      %v768 = vsel %vm414, %v765, 0
      %v770 = vsel %vm414, %v767, 0
      %v773 = vsel %vm419, %v761, 0
      %775 = vmatprep.subr.mxu0 0.0
      %776 = vmatpush1.msra.mxu0 %v773
      %777 = vmatprep.subr.mxu0 0.0
      %778 = vmatpush1.msra.mxu0 0.0
      %779 = vmatprep.subr.mxu0 0.0
      %780 = vmatpush1.msra.mxu0 0.0
      %781 = vmatprep.subr.mxu0 0.0
      %782 = vmatpush1.msra.mxu0 0.0
      %783 = vmatprep.subr.mxu0 0.0
      %784 = vmatpush1.msra.mxu0 0.0
      %785 = vmatprep.subr.mxu0 0.0
      %786 = vmatpush1.msra.mxu0 0.0
      %787 = vmatprep.subr.mxu0 0.0
      %788 = vmatpush1.msra.mxu0 0.0
      %789 = vmatprep.subr.mxu0 0.0
      %790 = vmatpush1.msra.mxu0 0.0
      %791 = vmatprep.subr.mxu0 0.0
      %792 = vmatpush1.msra.mxu0 0.0
      %793 = vmatprep.subr.mxu0 0.0
      %794 = vmatpush1.msra.mxu0 0.0
      %795 = vmatprep.subr.mxu0 0.0
      %796 = vmatpush1.msra.mxu0 0.0
      %797 = vmatprep.subr.mxu0 0.0
      %798 = vmatpush1.msra.mxu0 0.0
      %799 = vmatprep.subr.mxu0 0.0
      %800 = vmatpush1.msra.mxu0 0.0
      %801 = vmatprep.subr.mxu0 0.0
      %802 = vmatpush1.msra.mxu0 0.0
      %803 = vmatprep.subr.mxu0 0.0
      %804 = vmatpush1.msra.mxu0 0.0
      %805 = vmatprep.subr.mxu0 0.0
      %806 = vmatpush1.msra.mxu0 0.0
      %807 = vmatprep.subr.mxu0 0.0
      %808 = vmatpush1.msra.mxu0 0.0
      %809 = vmatprep.subr.mxu0 0.0
      %810 = vmatpush1.msra.mxu0 0.0
      %811 = vmatprep.subr.mxu0 0.0
      %812 = vmatpush1.msra.mxu0 0.0
      %813 = vmatprep.subr.mxu0 0.0
      %814 = vmatpush1.msra.mxu0 0.0
      %815 = vmatprep.subr.mxu0 0.0
      %816 = vmatpush1.msra.mxu0 0.0
      %817 = vmatprep.subr.mxu0 0.0
      %818 = vmatpush1.msra.mxu0 0.0
      %819 = vmatprep.subr.mxu0 0.0
      %820 = vmatpush1.msra.mxu0 0.0
      %821 = vmatprep.subr.mxu0 0.0
      %822 = vmatpush1.msra.mxu0 0.0
      %823 = vmatprep.subr.mxu0 0.0
      %824 = vmatpush1.msra.mxu0 0.0
      %825 = vmatprep.subr.mxu0 0.0
      %826 = vmatpush1.msra.mxu0 0.0
      %827 = vmatprep.subr.mxu0 0.0
      %828 = vmatpush1.msra.mxu0 0.0
      %829 = vmatprep.subr.mxu0 0.0
      %830 = vmatpush1.msra.mxu0 0.0
      %831 = vmatprep.subr.mxu0 0.0
      %832 = vmatpush1.msra.mxu0 0.0
      %833 = vmatprep.subr.mxu0 0.0
      %834 = vmatpush1.msra.mxu0 0.0
      %835 = vmatprep.subr.mxu0 0.0
      %836 = vmatpush1.msra.mxu0 0.0
      %837 = vmatprep.subr.mxu0 0.0
      %838 = vmatpush1.msra.mxu0 0.0
      %839 = vmatprep.mubr.f32.mxu0 0.0
      %840 = vmatmul.mubr.f32.gmra.mrb[0].mxu0 %v768
      %v841 = vpop.f32.mrb[0].mxu0
      %v842 = vadd.f32 0.0, %v841
      %v843 = vpop.f32.mrb[0].mxu0
      %844 = vmatprep.mubr.f32.mxu0 0.0
      %845 = vmatmul.mubr.f32.gmra.mrb[0].mxu0 %v770
      %v846 = vpop.f32.mrb[0].mxu0
      %v847 = vadd.f32 0.0, %v846
      %v848 = vpop.f32.mrb[0].mxu0
      %849 = vdwg.mxu0
      %v850 = vadd.f32 %v758, %v842
      %v851 = vadd.f32 %v759, %v847
      %s852 = scalar_lea.vmem %s3, 20
      %v853 = vld [vmem:[%s852] sm:$0xf]
      %v854 = vrot.slane %v396, 2
      %v855 = vrot.slane %v397, 2
      %v856 = vsel %vm582, %v854, %v855
      %v857 = vrot.slane %v398, 2
      %v858 = vsel %vm582, %v855, %v857
      %v859 = vsel %vm414, %v856, 0
      %v861 = vsel %vm414, %v858, 0
      %v864 = vsel %vm419, %v853, 0
      %866 = vmatprep.subr.mxu0 0.0
      %867 = vmatpush1.msra.mxu0 %v864
      %868 = vmatprep.subr.mxu0 0.0
      %869 = vmatpush1.msra.mxu0 0.0
      %870 = vmatprep.subr.mxu0 0.0
      %871 = vmatpush1.msra.mxu0 0.0
      %872 = vmatprep.subr.mxu0 0.0
      %873 = vmatpush1.msra.mxu0 0.0
      %874 = vmatprep.subr.mxu0 0.0
      %875 = vmatpush1.msra.mxu0 0.0
      %876 = vmatprep.subr.mxu0 0.0
      %877 = vmatpush1.msra.mxu0 0.0
      %878 = vmatprep.subr.mxu0 0.0
      %879 = vmatpush1.msra.mxu0 0.0
      %880 = vmatprep.subr.mxu0 0.0
      %881 = vmatpush1.msra.mxu0 0.0
      %882 = vmatprep.subr.mxu0 0.0
      %883 = vmatpush1.msra.mxu0 0.0
      %884 = vmatprep.subr.mxu0 0.0
      %885 = vmatpush1.msra.mxu0 0.0
      %886 = vmatprep.subr.mxu0 0.0
      %887 = vmatpush1.msra.mxu0 0.0
      %888 = vmatprep.subr.mxu0 0.0
      %889 = vmatpush1.msra.mxu0 0.0
      %890 = vmatprep.subr.mxu0 0.0
      %891 = vmatpush1.msra.mxu0 0.0
      %892 = vmatprep.subr.mxu0 0.0
      %893 = vmatpush1.msra.mxu0 0.0
      %894 = vmatprep.subr.mxu0 0.0
      %895 = vmatpush1.msra.mxu0 0.0
      %896 = vmatprep.subr.mxu0 0.0
      %897 = vmatpush1.msra.mxu0 0.0
      %898 = vmatprep.subr.mxu0 0.0
      %899 = vmatpush1.msra.mxu0 0.0
      %900 = vmatprep.subr.mxu0 0.0
      %901 = vmatpush1.msra.mxu0 0.0
      %902 = vmatprep.subr.mxu0 0.0
      %903 = vmatpush1.msra.mxu0 0.0
      %904 = vmatprep.subr.mxu0 0.0
      %905 = vmatpush1.msra.mxu0 0.0
      %906 = vmatprep.subr.mxu0 0.0
      %907 = vmatpush1.msra.mxu0 0.0
      %908 = vmatprep.subr.mxu0 0.0
      %909 = vmatpush1.msra.mxu0 0.0
      %910 = vmatprep.subr.mxu0 0.0
      %911 = vmatpush1.msra.mxu0 0.0
      %912 = vmatprep.subr.mxu0 0.0
      %913 = vmatpush1.msra.mxu0 0.0
      %914 = vmatprep.subr.mxu0 0.0
      %915 = vmatpush1.msra.mxu0 0.0
      %916 = vmatprep.subr.mxu0 0.0
      %917 = vmatpush1.msra.mxu0 0.0
      %918 = vmatprep.subr.mxu0 0.0
      %919 = vmatpush1.msra.mxu0 0.0
      %920 = vmatprep.subr.mxu0 0.0
      %921 = vmatpush1.msra.mxu0 0.0
      %922 = vmatprep.subr.mxu0 0.0
      %923 = vmatpush1.msra.mxu0 0.0
      %924 = vmatprep.subr.mxu0 0.0
      %925 = vmatpush1.msra.mxu0 0.0
      %926 = vmatprep.subr.mxu0 0.0
      %927 = vmatpush1.msra.mxu0 0.0
      %928 = vmatprep.subr.mxu0 0.0
      %929 = vmatpush1.msra.mxu0 0.0
      %930 = vmatprep.mubr.f32.mxu0 0.0
      %931 = vmatmul.mubr.f32.gmra.mrb[0].mxu0 %v859
      %v932 = vpop.f32.mrb[0].mxu0
      %v933 = vadd.f32 0.0, %v932
      %v934 = vpop.f32.mrb[0].mxu0
      %935 = vmatprep.mubr.f32.mxu0 0.0
      %936 = vmatmul.mubr.f32.gmra.mrb[0].mxu0 %v861
      %v937 = vpop.f32.mrb[0].mxu0
      %v938 = vadd.f32 0.0, %v937
      %v939 = vpop.f32.mrb[0].mxu0
      %940 = vdwg.mxu0
      %v941 = vadd.f32 %v850, %v933
      %v942 = vadd.f32 %v851, %v938
      %s943 = scalar_lea.vmem %s3, 24
      %v944 = vld [vmem:[%s943] sm:$0xf]
      %v946 = vsel %vm414, %v399, 0
      %v949 = vsel %vm414, %v400, 0
      %v952 = vsel %vm419, %v944, 0
      %954 = vmatprep.subr.mxu0 0.0
      %955 = vmatpush1.msra.mxu0 %v952
      %956 = vmatprep.subr.mxu0 0.0
      %957 = vmatpush1.msra.mxu0 0.0
      %958 = vmatprep.subr.mxu0 0.0
      %959 = vmatpush1.msra.mxu0 0.0
      %960 = vmatprep.subr.mxu0 0.0
      %961 = vmatpush1.msra.mxu0 0.0
      %962 = vmatprep.subr.mxu0 0.0
      %963 = vmatpush1.msra.mxu0 0.0
      %964 = vmatprep.subr.mxu0 0.0
      %965 = vmatpush1.msra.mxu0 0.0
      %966 = vmatprep.subr.mxu0 0.0
      %967 = vmatpush1.msra.mxu0 0.0
      %968 = vmatprep.subr.mxu0 0.0
      %969 = vmatpush1.msra.mxu0 0.0
      %970 = vmatprep.subr.mxu0 0.0
      %971 = vmatpush1.msra.mxu0 0.0
      %972 = vmatprep.subr.mxu0 0.0
      %973 = vmatpush1.msra.mxu0 0.0
      %974 = vmatprep.subr.mxu0 0.0
      %975 = vmatpush1.msra.mxu0 0.0
      %976 = vmatprep.subr.mxu0 0.0
      %977 = vmatpush1.msra.mxu0 0.0
      %978 = vmatprep.subr.mxu0 0.0
      %979 = vmatpush1.msra.mxu0 0.0
      %980 = vmatprep.subr.mxu0 0.0
      %981 = vmatpush1.msra.mxu0 0.0
      %982 = vmatprep.subr.mxu0 0.0
      %983 = vmatpush1.msra.mxu0 0.0
      %984 = vmatprep.subr.mxu0 0.0
      %985 = vmatpush1.msra.mxu0 0.0
      %986 = vmatprep.subr.mxu0 0.0
      %987 = vmatpush1.msra.mxu0 0.0
      %988 = vmatprep.subr.mxu0 0.0
      %989 = vmatpush1.msra.mxu0 0.0
      %990 = vmatprep.subr.mxu0 0.0
      %991 = vmatpush1.msra.mxu0 0.0
      %992 = vmatprep.subr.mxu0 0.0
      %993 = vmatpush1.msra.mxu0 0.0
      %994 = vmatprep.subr.mxu0 0.0
      %995 = vmatpush1.msra.mxu0 0.0
      %996 = vmatprep.subr.mxu0 0.0
      %997 = vmatpush1.msra.mxu0 0.0
      %998 = vmatprep.subr.mxu0 0.0
      %999 = vmatpush1.msra.mxu0 0.0
      %1000 = vmatprep.subr.mxu0 0.0
      %1001 = vmatpush1.msra.mxu0 0.0
      %1002 = vmatprep.subr.mxu0 0.0
      %1003 = vmatpush1.msra.mxu0 0.0
      %1004 = vmatprep.subr.mxu0 0.0
      %1005 = vmatpush1.msra.mxu0 0.0
      %1006 = vmatprep.subr.mxu0 0.0
      %1007 = vmatpush1.msra.mxu0 0.0
      %1008 = vmatprep.subr.mxu0 0.0
      %1009 = vmatpush1.msra.mxu0 0.0
      %1010 = vmatprep.subr.mxu0 0.0
      %1011 = vmatpush1.msra.mxu0 0.0
      %1012 = vmatprep.subr.mxu0 0.0
      %1013 = vmatpush1.msra.mxu0 0.0
      %1014 = vmatprep.subr.mxu0 0.0
      %1015 = vmatpush1.msra.mxu0 0.0
      %1016 = vmatprep.subr.mxu0 0.0
      %1017 = vmatpush1.msra.mxu0 0.0
      %1018 = vmatprep.mubr.f32.mxu0 0.0
      %1019 = vmatmul.mubr.f32.gmra.mrb[0].mxu0 %v946
      %v1020 = vpop.f32.mrb[0].mxu0
      %v1021 = vadd.f32 0.0, %v1020
      %v1022 = vpop.f32.mrb[0].mxu0
      %1023 = vmatprep.mubr.f32.mxu0 0.0
      %1024 = vmatmul.mubr.f32.gmra.mrb[0].mxu0 %v949
      %v1025 = vpop.f32.mrb[0].mxu0
      %v1026 = vadd.f32 0.0, %v1025
      %v1027 = vpop.f32.mrb[0].mxu0
      %1028 = vdwg.mxu0
      %v1029 = vadd.f32 %v941, %v1021
      %v1030 = vadd.f32 %v942, %v1026
      %s1031 = scalar_lea.vmem %s3, 28
      %v1032 = vld [vmem:[%s1031] sm:$0xf]
      %v1034 = vrot.slane %v399, 1
      %v1035 = vrot.slane %v400, 1
      %v1036 = vsel %vm408, %v1034, %v1035
      %v1037 = vrot.slane %v401, 1
      %v1038 = vsel %vm408, %v1035, %v1037
      %v1039 = vsel %vm414, %v1036, 0
      %v1041 = vsel %vm414, %v1038, 0
      %v1044 = vsel %vm419, %v1032, 0
      %1046 = vmatprep.subr.mxu0 0.0
      %1047 = vmatpush1.msra.mxu0 %v1044
      %1048 = vmatprep.subr.mxu0 0.0
      %1049 = vmatpush1.msra.mxu0 0.0
      %1050 = vmatprep.subr.mxu0 0.0
      %1051 = vmatpush1.msra.mxu0 0.0
      %1052 = vmatprep.subr.mxu0 0.0
      %1053 = vmatpush1.msra.mxu0 0.0
      %1054 = vmatprep.subr.mxu0 0.0
      %1055 = vmatpush1.msra.mxu0 0.0
      %1056 = vmatprep.subr.mxu0 0.0
      %1057 = vmatpush1.msra.mxu0 0.0
      %1058 = vmatprep.subr.mxu0 0.0
      %1059 = vmatpush1.msra.mxu0 0.0
      %1060 = vmatprep.subr.mxu0 0.0
      %1061 = vmatpush1.msra.mxu0 0.0
      %1062 = vmatprep.subr.mxu0 0.0
      %1063 = vmatpush1.msra.mxu0 0.0
      %1064 = vmatprep.subr.mxu0 0.0
      %1065 = vmatpush1.msra.mxu0 0.0
      %1066 = vmatprep.subr.mxu0 0.0
      %1067 = vmatpush1.msra.mxu0 0.0
      %1068 = vmatprep.subr.mxu0 0.0
      %1069 = vmatpush1.msra.mxu0 0.0
      %1070 = vmatprep.subr.mxu0 0.0
      %1071 = vmatpush1.msra.mxu0 0.0
      %1072 = vmatprep.subr.mxu0 0.0
      %1073 = vmatpush1.msra.mxu0 0.0
      %1074 = vmatprep.subr.mxu0 0.0
      %1075 = vmatpush1.msra.mxu0 0.0
      %1076 = vmatprep.subr.mxu0 0.0
      %1077 = vmatpush1.msra.mxu0 0.0
      %1078 = vmatprep.subr.mxu0 0.0
      %1079 = vmatpush1.msra.mxu0 0.0
      %1080 = vmatprep.subr.mxu0 0.0
      %1081 = vmatpush1.msra.mxu0 0.0
      %1082 = vmatprep.subr.mxu0 0.0
      %1083 = vmatpush1.msra.mxu0 0.0
      %1084 = vmatprep.subr.mxu0 0.0
      %1085 = vmatpush1.msra.mxu0 0.0
      %1086 = vmatprep.subr.mxu0 0.0
      %1087 = vmatpush1.msra.mxu0 0.0
      %1088 = vmatprep.subr.mxu0 0.0
      %1089 = vmatpush1.msra.mxu0 0.0
      %1090 = vmatprep.subr.mxu0 0.0
      %1091 = vmatpush1.msra.mxu0 0.0
      %1092 = vmatprep.subr.mxu0 0.0
      %1093 = vmatpush1.msra.mxu0 0.0
      %1094 = vmatprep.subr.mxu0 0.0
      %1095 = vmatpush1.msra.mxu0 0.0
      %1096 = vmatprep.subr.mxu0 0.0
      %1097 = vmatpush1.msra.mxu0 0.0
      %1098 = vmatprep.subr.mxu0 0.0
      %1099 = vmatpush1.msra.mxu0 0.0
      %1100 = vmatprep.subr.mxu0 0.0
      %1101 = vmatpush1.msra.mxu0 0.0
      %1102 = vmatprep.subr.mxu0 0.0
      %1103 = vmatpush1.msra.mxu0 0.0
      %1104 = vmatprep.subr.mxu0 0.0
      %1105 = vmatpush1.msra.mxu0 0.0
      %1106 = vmatprep.subr.mxu0 0.0
      %1107 = vmatpush1.msra.mxu0 0.0
      %1108 = vmatprep.subr.mxu0 0.0
      %1109 = vmatpush1.msra.mxu0 0.0
      %1110 = vmatprep.mubr.f32.mxu0 0.0
      %1111 = vmatmul.mubr.f32.gmra.mrb[0].mxu0 %v1039
      %v1112 = vpop.f32.mrb[0].mxu0
      %v1113 = vadd.f32 0.0, %v1112
      %v1114 = vpop.f32.mrb[0].mxu0
      %1115 = vmatprep.mubr.f32.mxu0 0.0
      %1116 = vmatmul.mubr.f32.gmra.mrb[0].mxu0 %v1041
      %v1117 = vpop.f32.mrb[0].mxu0
      %v1118 = vadd.f32 0.0, %v1117
      %v1119 = vpop.f32.mrb[0].mxu0
      %1120 = vdwg.mxu0
      %v1121 = vadd.f32 %v1029, %v1113
      %v1122 = vadd.f32 %v1030, %v1118
      %s1123 = scalar_lea.vmem %s3, 32
      %v1124 = vld [vmem:[%s1123] sm:$0xf]
      %v1125 = vrot.slane %v399, 2
      %v1126 = vrot.slane %v400, 2
      %v1127 = vsel %vm582, %v1125, %v1126
      %v1128 = vrot.slane %v401, 2
      %v1129 = vsel %vm582, %v1126, %v1128
      %v1130 = vsel %vm414, %v1127, 0
      %v1132 = vsel %vm414, %v1129, 0
      %v1135 = vsel %vm419, %v1124, 0
      %1137 = vmatprep.subr.mxu0 0.0
      %1138 = vmatpush1.msra.mxu0 %v1135
      %1139 = vmatprep.subr.mxu0 0.0
      %1140 = vmatpush1.msra.mxu0 0.0
      %1141 = vmatprep.subr.mxu0 0.0
      %1142 = vmatpush1.msra.mxu0 0.0
      %1143 = vmatprep.subr.mxu0 0.0
      %1144 = vmatpush1.msra.mxu0 0.0
      %1145 = vmatprep.subr.mxu0 0.0
      %1146 = vmatpush1.msra.mxu0 0.0
      %1147 = vmatprep.subr.mxu0 0.0
      %1148 = vmatpush1.msra.mxu0 0.0
      %1149 = vmatprep.subr.mxu0 0.0
      %1150 = vmatpush1.msra.mxu0 0.0
      %1151 = vmatprep.subr.mxu0 0.0
      %1152 = vmatpush1.msra.mxu0 0.0
      %1153 = vmatprep.subr.mxu0 0.0
      %1154 = vmatpush1.msra.mxu0 0.0
      %1155 = vmatprep.subr.mxu0 0.0
      %1156 = vmatpush1.msra.mxu0 0.0
      %1157 = vmatprep.subr.mxu0 0.0
      %1158 = vmatpush1.msra.mxu0 0.0
      %1159 = vmatprep.subr.mxu0 0.0
      %1160 = vmatpush1.msra.mxu0 0.0
      %1161 = vmatprep.subr.mxu0 0.0
      %1162 = vmatpush1.msra.mxu0 0.0
      %1163 = vmatprep.subr.mxu0 0.0
      %1164 = vmatpush1.msra.mxu0 0.0
      %1165 = vmatprep.subr.mxu0 0.0
      %1166 = vmatpush1.msra.mxu0 0.0
      %1167 = vmatprep.subr.mxu0 0.0
      %1168 = vmatpush1.msra.mxu0 0.0
      %1169 = vmatprep.subr.mxu0 0.0
      %1170 = vmatpush1.msra.mxu0 0.0
      %1171 = vmatprep.subr.mxu0 0.0
      %1172 = vmatpush1.msra.mxu0 0.0
      %1173 = vmatprep.subr.mxu0 0.0
      %1174 = vmatpush1.msra.mxu0 0.0
      %1175 = vmatprep.subr.mxu0 0.0
      %1176 = vmatpush1.msra.mxu0 0.0
      %1177 = vmatprep.subr.mxu0 0.0
      %1178 = vmatpush1.msra.mxu0 0.0
      %1179 = vmatprep.subr.mxu0 0.0
      %1180 = vmatpush1.msra.mxu0 0.0
      %1181 = vmatprep.subr.mxu0 0.0
      %1182 = vmatpush1.msra.mxu0 0.0
      %1183 = vmatprep.subr.mxu0 0.0
      %1184 = vmatpush1.msra.mxu0 0.0
      %1185 = vmatprep.subr.mxu0 0.0
      %1186 = vmatpush1.msra.mxu0 0.0
      %1187 = vmatprep.subr.mxu0 0.0
      %1188 = vmatpush1.msra.mxu0 0.0
      %1189 = vmatprep.subr.mxu0 0.0
      %1190 = vmatpush1.msra.mxu0 0.0
      %1191 = vmatprep.subr.mxu0 0.0
      %1192 = vmatpush1.msra.mxu0 0.0
      %1193 = vmatprep.subr.mxu0 0.0
      %1194 = vmatpush1.msra.mxu0 0.0
      %1195 = vmatprep.subr.mxu0 0.0
      %1196 = vmatpush1.msra.mxu0 0.0
      %1197 = vmatprep.subr.mxu0 0.0
      %1198 = vmatpush1.msra.mxu0 0.0
      %1199 = vmatprep.subr.mxu0 0.0
      %1200 = vmatpush1.msra.mxu0 0.0
      %1201 = vmatprep.mubr.f32.mxu0 0.0
      %1202 = vmatmul.mubr.f32.gmra.mrb[0].mxu0 %v1130
      %v1203 = vpop.f32.mrb[0].mxu0
      %v1204 = vadd.f32 0.0, %v1203
      %v1205 = vpop.f32.mrb[0].mxu0
      %1206 = vmatprep.mubr.f32.mxu0 0.0
      %1207 = vmatmul.mubr.f32.gmra.mrb[0].mxu0 %v1132
      %v1208 = vpop.f32.mrb[0].mxu0
      %v1209 = vadd.f32 0.0, %v1208
      %v1210 = vpop.f32.mrb[0].mxu0
      %1211 = vdwg.mxu0
      %v1212 = vadd.f32 %v1121, %v1204
      %v1213 = vadd.f32 %v1122, %v1209
      %1214 = vst [vmem:[%s380] sm:$0xff] %v1212
      %1215 = vst [vmem:[%s380 + $0x8] sm:$0xff] %v1213
      %v1216 = vld [vmem:[%s383] sm:$0x1]
      %v1217 = vadd.f32 %v1212, %v1213
      %v1218 = vrot.slane %v1217, 4
      %v1219 = vadd.f32 %v1217, %v1218
      %v1220 = vrot.slane %v1219, 2
      %v1221 = vadd.f32 %v1219, %v1220
      %v1222 = vrot.slane %v1221, 1
      %v1223 = vadd.f32 %v1221, %v1222
      %v1224 = vadd.f32 %v1216, %v1223
      %1225 = vst [vmem:[%s383] sm:$0x1] %v1224
      %v1226 = vld [vmem:[%s386] sm:$0x1]
      %v1227 = vmul.f32 %v1212, %v1212
      %v1228 = vmul.f32 %v1213, %v1213
      %v1229 = vadd.f32 %v1227, %v1228
      %v1230 = vrot.slane %v1229, 4
      %v1231 = vadd.f32 %v1229, %v1230
      %v1232 = vrot.slane %v1231, 2
      %v1233 = vadd.f32 %v1231, %v1232
      %v1234 = vrot.slane %v1233, 1
      %v1235 = vadd.f32 %v1233, %v1234
      %v1236 = vadd.f32 %v1226, %v1235
      %1237 = vst [vmem:[%s386] sm:$0x1] %v1236
      %p1238 = scmp.lt.s32.totalorder %s22, 1
      %s1239 = scalar_select %p1238, %s22, 1
      %p1240 = scmp.lt.s32.totalorder %s23, 15
      %s1241 = scalar_select %p1240, %s23, 15
      %s1242 = smul.addr %s1241, 2
      %s1243 = smul.addr %s1239, 32
      %s1244 = sadd.s32 %s1242, %s1243
      %s1245 = smul.addr %s1244, 8
      %s1246 = scalar_lea.vmem %s4, %s1245
      %p1247 = scmp.lt.s32.totalorder %s22, 1
      %s1248 = scalar_select %p1247, %s22, 1
      %s1249 = scalar_lea.vmem %s5, %s1248
      %p1250 = scmp.lt.s32.totalorder %s22, 1
      %s1251 = scalar_select %p1250, %s22, 1
      %s1252 = scalar_lea.vmem %s6, %s1251
      // Predicated region
      $region41: #{conv_block_forward.1} parent=35 // pred_check
        %p1253 = pneg %p159
      $region42: #{conv_block_forward.1} parent=35 // pred_check_branch
        %1255 = sbr.rel (%p1253) target = $region44
      $region43: #{conv_block_forward.1} parent=35 // pred_region
        _
      $region44: #{conv_block_forward.1} parent=35 // pred_fallthru
        _
      // Predicated region
      $region45: #{conv_block_forward.1} parent=35 // pred_check
        %p1256 = pneg %p185
      $region46: #{conv_block_forward.1} parent=35 // pred_check_branch
        %1258 = sbr.rel (%p1256) target = $region48
      $region47: #{conv_block_forward.1} parent=35 // pred_region
        _
      $region48: #{conv_block_forward.1} parent=35 // pred_fallthru
        _
      // Predicated region
      $region49: #{conv_block_forward.1} parent=35 // pred_check
        %p1259 = pneg %p211
      $region50: #{conv_block_forward.1} parent=35 // pred_check_branch
        %1261 = sbr.rel (%p1259) target = $region52
      $region51: #{conv_block_forward.1} parent=35 // pred_region
        _
      $region52: #{conv_block_forward.1} parent=35 // pred_fallthru
        _
    $region36: #{conv_block_forward.1} parent=5 // pred_fallthru
      _
    %p1262 = scmp.le.s32.totalorder 2, %s13
    // Predicated region
    $region53: #{conv_block_forward.1} parent=5 // pred_check
      %p1263 = pneg %p1262
    $region54: #{conv_block_forward.1} parent=5 // pred_check_branch
      %1265 = sbr.rel (%p1263) target = $region56
    $region55: #{conv_block_forward.1} parent=5 // pred_region
      %s1266 = ssub.s32 %s13, 2
      // Predicated region
      $region57: #{conv_block_forward.1} parent=55 // pred_check
        %p1267 = pneg %p165
      $region58: #{conv_block_forward.1} parent=55 // pred_check_branch
        %1269 = sbr.rel (%p1267) target = $region60
      $region59: #{conv_block_forward.1} parent=55 // pred_region
        %p1270 = scmp.lt.s32.totalorder %s24, 1
        %s1271 = scalar_select %p1270, %s24, 1
        %p1272 = scmp.lt.s32.totalorder %s25, 15
        %s1273 = scalar_select %p1272, %s25, 15
        %s1274 = smul.addr %s1273, 2
        %s1275 = smul.addr %s1271, 32
        %s1276 = sadd.s32 %s1274, %s1275
        %s1277 = smul.addr %s1276, 8
        %s1278 = scalar_lea.vmem %s4, %s1277
      $region60: #{conv_block_forward.1} parent=55 // pred_fallthru
        _
      // Predicated region
      $region61: #{conv_block_forward.1} parent=55 // pred_check
        %p1279 = pneg %p191
      $region62: #{conv_block_forward.1} parent=55 // pred_check_branch
        %1281 = sbr.rel (%p1279) target = $region64
      $region63: #{conv_block_forward.1} parent=55 // pred_region
        %p1282 = scmp.lt.s32.totalorder %s24, 1
        %s1283 = scalar_select %p1282, %s24, 1
        %s1284 = scalar_lea.vmem %s5, %s1283
      $region64: #{conv_block_forward.1} parent=55 // pred_fallthru
        _
      // Predicated region
      $region65: #{conv_block_forward.1} parent=55 // pred_check
        %p1285 = pneg %p217
      $region66: #{conv_block_forward.1} parent=55 // pred_check_branch
        %1287 = sbr.rel (%p1285) target = $region68
      $region67: #{conv_block_forward.1} parent=55 // pred_region
        %p1288 = scmp.lt.s32.totalorder %s24, 1
        %s1289 = scalar_select %p1288, %s24, 1
        %s1290 = scalar_lea.vmem %s6, %s1289
      $region68: #{conv_block_forward.1} parent=55 // pred_fallthru
        _
    $region56: #{conv_block_forward.1} parent=5 // pred_fallthru
      _
  $region6: #{conv_block_forward.1} parent=0 // loop_footer
    %s17 = sadd.s32 1, %s13
  $region7: #{conv_block_forward.1} parent=0 // loop_footer_branch
    %12 = sbr.rel target = $region3
  $region8: #{conv_block_forward.1} parent=0 // loop_exit
    _

</llo_original>
